<compile_context>
chip_gen: v7x
topology: tpu7x:2x2x1
jax: 0.10.0
libtpu: 0.0.40
codegen_flags: <defaults>
</compile_context>

<pallas_src>
import math

import jax
import jax.numpy as jnp
from jax.experimental import pallas as pl
from jax.experimental.pallas import tpu as pltpu


def _bpr_kernel(p_col_ref, pos_ref, p_row_ref, neg_ref, out_ref):
    """One (tm, tn) tile of the pairwise BPR loss, accumulated over col tiles."""
    j = pl.program_id(1)

    @pl.when(j == 0)
    def _init():
        out_ref[...] = jnp.zeros_like(out_ref)

    p_i = p_col_ref[:, 0:1]            # (tm, 1)  scores along the "positive" axis
    p_j = p_row_ref[...]               # (1, tn)  scores along the "negative" axis
    pos = pos_ref[...]                 # (1, tm)  mask: y_true == 1
    neg = neg_ref[...]                 # (1, tn)  mask: y_true == 0

    # loss[i, j] = -log(sigmoid(p[i] - p[j])) = softplus(p[j] - p[i]), stable form.
    x = p_j - p_i                                                  # (tm, tn)
    loss = jnp.maximum(x, 0.0) + jnp.log1p(jnp.exp(-jnp.abs(x)))

    # Fold the pos mask and the row (sublane) reduction into one MXU matmul:
    # (1, tm) @ (tm, tn) -> (1, tn) lane-dense partials, f32 accumulation.
    partial = jnp.dot(pos, loss, preferred_element_type=jnp.float32)
    # Column (neg) mask applied post-dot: O(tn) instead of O(tm*tn) multiplies.
    out_ref[...] += (partial * neg.astype(jnp.float32))[None, :, :]


def _default_compute_dtype():
    """bf16 elementwise wins on v6e/v7x (native bf16 VPU/EUP); f32 elsewhere."""
    try:
        kind = jax.devices()[0].device_kind.lower()
    except Exception:
        return jnp.float32
    if "v6" in kind or "v7" in kind:
        return jnp.bfloat16
    return jnp.float32


def bpr_loss(y_pred, y_true, reduction="mean", np_ratio=None, *,
             block_m=256, block_n=512, compute_dtype=None):
    """Pallas implementation of BPRLoss.forward (np_ratio=None path)."""
    if np_ratio is not None:
        # TODO(synk): np_ratio random negative sub-sampling needs a
        # data-dependent, variable-size gather; not implemented here.
        raise NotImplementedError("np_ratio sampling not supported")
    if compute_dtype is None:
        compute_dtype = _default_compute_dtype()

    y_pred = jnp.asarray(y_pred, jnp.float32).reshape(-1)
    y_true = jnp.asarray(y_true).reshape(-1)
    n = y_pred.shape[0]

    pos_mask = (y_true == 1)
    neg_mask = (y_true == 0)
    # O(N) pair count stays in plain JAX; it does not belong in the O(N^2) kernel.
    num_pos = jnp.sum(pos_mask.astype(jnp.float32))
    num_neg = jnp.sum(neg_mask.astype(jnp.float32))

    # Pad N so both tilings divide evenly; zero-padded masks exclude the pads.
    mult = math.lcm(block_m, block_n)
    n_pad = max(mult, ((n + mult - 1) // mult) * mult)
    pad = n_pad - n

    p = jnp.pad(y_pred, (0, pad)).astype(compute_dtype)
    pos = jnp.pad(pos_mask.astype(compute_dtype), (0, pad))
    neg = jnp.pad(neg_mask.astype(compute_dtype), (0, pad))

    p_row = p.reshape(1, n_pad)
    pos_row = pos.reshape(1, n_pad)
    neg_row = neg.reshape(1, n_pad)
    # Lane-replicated column slab: lane-dense DMA for the "i" operand,
    # no lane-sparse (tm, 1) loads, no in-kernel transpose.
    p_col = jnp.broadcast_to(p.reshape(n_pad, 1), (n_pad, 128))

    n_row_tiles = n_pad // block_m
    n_col_tiles = n_pad // block_n

    partials = pl.pallas_call(
        _bpr_kernel,
        out_shape=jax.ShapeDtypeStruct((n_row_tiles, 1, block_n), jnp.float32),
        grid=(n_row_tiles, n_col_tiles),
        in_specs=[
            pl.BlockSpec((block_m, 128), lambda i, j: (i, 0)),   # replicated scores
            pl.BlockSpec((1, block_m), lambda i, j: (0, i)),     # pos mask row
            pl.BlockSpec((1, block_n), lambda i, j: (0, j)),     # scores row
            pl.BlockSpec((1, block_n), lambda i, j: (0, j)),     # neg mask row
        ],
        out_specs=pl.BlockSpec((1, 1, block_n), lambda i, j: (i, 0, 0)),
        compiler_params=pltpu.CompilerParams(
            dimension_semantics=("parallel", "arbitrary"),
            vmem_limit_bytes=32 * 1024 * 1024),
    )(p_col, pos_row, p_row, neg_row)

    loss_sum = jnp.sum(partials)

    if reduction == "mean":
        # NaN if there are no positives or no negatives (matches torch empty mean).
        return loss_sum / (num_pos * num_neg)
    elif reduction == "sum":
        return loss_sum
    else:
        # TODO(synk): reduction='none' returns a (num_pos, num_neg) matrix with a
        # data-dependent shape; no static-shape Pallas equivalent is provided.
        raise NotImplementedError("reduction='none' not supported")


def _reference_bpr(y_pred, y_true, reduction="mean"):
    """Pure-JAX reference mirroring the PyTorch semantics (for checking)."""
    y_pred = jnp.asarray(y_pred, jnp.float32).reshape(-1)
    y_true = jnp.asarray(y_true).reshape(-1)
    pos = (y_true == 1).astype(jnp.float32)
    neg = (y_true == 0).astype(jnp.float32)
    diff = y_pred[:, None] - y_pred[None, :]
    loss = -jnp.log(jax.nn.sigmoid(diff))
    w = pos[:, None] * neg[None, :]
    total = jnp.sum(loss * w)
    if reduction == "sum":
        return total
    return total / (jnp.sum(pos) * jnp.sum(neg))


if __name__ == "__main__":
    key = jax.random.PRNGKey(0)
    k_pred, k_lab = jax.random.split(key)

    N = 16  # small flat batch of scores
    y_pred = jax.random.normal(k_pred, (N,), dtype=jnp.float32)
    y_true = (jax.random.uniform(k_lab, (N,)) < 0.4).astype(jnp.int32)
    # guarantee at least one positive and one negative (deterministic)
    y_true = y_true.at[0].set(1).at[1].set(0)

    out_mean = bpr_loss(y_pred, y_true, reduction="mean")
    out_sum = bpr_loss(y_pred, y_true, reduction="sum")
    jax.block_until_ready((out_mean, out_sum))

    ref_mean = _reference_bpr(y_pred, y_true, "mean")
    ref_sum = _reference_bpr(y_pred, y_true, "sum")
    # loose tolerance covers the bf16 elementwise fast path on v6e/v7x
    assert jnp.allclose(out_mean, ref_mean, rtol=3e-2, atol=3e-2), (out_mean, ref_mean)
    assert jnp.allclose(out_sum, ref_sum, rtol=3e-2, atol=3e-1), (out_sum, ref_sum)

    print("KERNEL_OK")
</pallas_src>

<mosaic_0001>
module attributes {stable_mosaic.version = 11 : i64} {
  func.func @_bpr_kernel(%arg0: i32, %arg1: i32, %arg2: memref<256x128xf32, #tpu.memory_space<vmem>>, %arg3: memref<1x256xf32, #tpu.memory_space<vmem>>, %arg4: memref<1x512xf32, #tpu.memory_space<vmem>>, %arg5: memref<1x512xf32, #tpu.memory_space<vmem>>, %arg6: memref<1x1x512xf32, #tpu.memory_space<vmem>>) attributes {dimension_semantics = [#tpu.dimension_semantics<parallel>, #tpu.dimension_semantics<arbitrary>], iteration_bounds = array<i64: 2, 1>, scalar_prefetch = 0 : i64, scratch_operands = 0 : i64, tpu.core_type = #tpu.core_type<tc>, window_params = [{transform_indices = @transform_0, window_bounds = array<i64: 256, 128>}, {transform_indices = @transform_1, window_bounds = array<i64: 1, 256>}, {transform_indices = @transform_2, window_bounds = array<i64: 1, 512>}, {transform_indices = @transform_3, window_bounds = array<i64: 1, 512>}, {transform_indices = @transform_4, window_bounds = array<i64: 1, 1, 512>}]} {
    %c0_i32 = arith.constant 0 : i32
    %0 = arith.cmpi eq, %arg1, %c0_i32 : i32
    %1 = arith.extui %0 : i1 to i32
    %c0_i32_0 = arith.constant 0 : i32
    %2 = arith.cmpi ne, %1, %c0_i32_0 : i32
    scf.if %2 {
      %cst_16 = arith.constant 0.000000e+00 : f32
      %24 = vector.broadcast %cst_16 : f32 to vector<1x1x512xf32>
      %c0_17 = arith.constant 0 : index
      %c0_18 = arith.constant 0 : index
      %c0_19 = arith.constant 0 : index
      %25 = vector.load %arg6[%c0_17, %c0_18, %c0_19] : memref<1x1x512xf32, #tpu.memory_space<vmem>>, vector<1x1x512xf32>
      tpu.vector_store %arg6[%c0_17, %c0_18, %c0_19], %24 {strides = array<i32>} : memref<1x1x512xf32, #tpu.memory_space<vmem>>, vector<1x1x512xf32>,
    } else {
    }
    %c0 = arith.constant 0 : index
    %c0_1 = arith.constant 0 : index
    %3 = vector.load %arg2[%c0, %c0_1] : memref<256x128xf32, #tpu.memory_space<vmem>>, vector<256x1xf32>
    %c0_2 = arith.constant 0 : index
    %c0_3 = arith.constant 0 : index
    %4 = vector.load %arg4[%c0_2, %c0_3] : memref<1x512xf32, #tpu.memory_space<vmem>>, vector<1x512xf32>
    %c0_4 = arith.constant 0 : index
    %c0_5 = arith.constant 0 : index
    %5 = vector.load %arg3[%c0_4, %c0_5] : memref<1x256xf32, #tpu.memory_space<vmem>>, vector<1x256xf32>
    %c0_6 = arith.constant 0 : index
    %c0_7 = arith.constant 0 : index
    %6 = vector.load %arg5[%c0_6, %c0_7] : memref<1x512xf32, #tpu.memory_space<vmem>>, vector<1x512xf32>
    %7 = vector.broadcast %4 : vector<1x512xf32> to vector<256x512xf32>
    %8 = vector.broadcast %3 : vector<256x1xf32> to vector<256x512xf32>
    %9 = arith.subf %7, %8 : vector<256x512xf32>
    %cst = arith.constant 0.000000e+00 : f32
    %10 = vector.broadcast %cst : f32 to vector<256x512xf32>
    %11 = arith.maximumf %9, %10 : vector<256x512xf32>
    %12 = math.absf %9 : vector<256x512xf32>
    %cst_8 = arith.constant 0.000000e+00 : f32
    %13 = vector.broadcast %cst_8 : f32 to vector<256x512xf32>
    %14 = arith.subf %13, %12 : vector<256x512xf32>
    %15 = math.exp %14 : vector<256x512xf32>
    %16 = math.log1p %15 : vector<256x512xf32>
    %17 = arith.addf %11, %16 : vector<256x512xf32>
    %cst_9 = arith.constant dense<0.000000e+00> : vector<1x512xf32>
    %18 = tpu.matmul %5, %17, %cst_9 {dimension_numbers = #tpu.dot_dimension_numbers<[1], [0], [0], [1], [0, 0, 1, 1], [], []>} : vector<1x256xf32>, vector<256x512xf32>, vector<1x512xf32> -> vector<1x512xf32>
    %c0_10 = arith.constant 0 : index
    %c0_11 = arith.constant 0 : index
    %c0_12 = arith.constant 0 : index
    %19 = vector.load %arg6[%c0_10, %c0_11, %c0_12] : memref<1x1x512xf32, #tpu.memory_space<vmem>>, vector<1x1x512xf32>
    %20 = arith.mulf %18, %6 : vector<1x512xf32>
    %21 = vector.shape_cast %20 : vector<1x512xf32> to vector<1x1x512xf32>
    %22 = arith.addf %19, %21 : vector<1x1x512xf32>
    %c0_13 = arith.constant 0 : index
    %c0_14 = arith.constant 0 : index
    %c0_15 = arith.constant 0 : index
    %23 = vector.load %arg6[%c0_13, %c0_14, %c0_15] : memref<1x1x512xf32, #tpu.memory_space<vmem>>, vector<1x1x512xf32>
    tpu.vector_store %arg6[%c0_13, %c0_14, %c0_15], %22 {strides = array<i32>} : memref<1x1x512xf32, #tpu.memory_space<vmem>>, vector<1x1x512xf32>,
    return
  }
  func.func @transform_0(%arg0: i32, %arg1: i32) -> (i32, i32) {
    %c0_i32 = arith.constant 0 : i32
    %c0_i32_0 = arith.constant 0 : i32
    return %arg0, %c0_i32 : i32, i32
  }
  func.func @transform_1(%arg0: i32, %arg1: i32) -> (i32, i32) {
    %c0_i32 = arith.constant 0 : i32
    %c0_i32_0 = arith.constant 0 : i32
    return %c0_i32, %arg0 : i32, i32
  }
  func.func @transform_2(%arg0: i32, %arg1: i32) -> (i32, i32) {
    %c0_i32 = arith.constant 0 : i32
    %c0_i32_0 = arith.constant 0 : i32
    return %c0_i32, %arg1 : i32, i32
  }
  func.func @transform_3(%arg0: i32, %arg1: i32) -> (i32, i32) {
    %c0_i32 = arith.constant 0 : i32
    %c0_i32_0 = arith.constant 0 : i32
    return %c0_i32, %arg1 : i32, i32
  }
  func.func @transform_4(%arg0: i32, %arg1: i32) -> (i32, i32, i32) {
    %c0_i32 = arith.constant 0 : i32
    %c0_i32_0 = arith.constant 0 : i32
    %c0_i32_1 = arith.constant 0 : i32
    return %arg0, %c0_i32, %c0_i32_0 : i32, i32, i32
  }
}

</mosaic_0001>

<llo_original>
// kernel: tpu_custom_call.1
$region0: #{tpu_custom_call.1}
  #allocation0 [shape = 'u32[]', space=smem, size = 0x4, offset = 0x4, fixed_abs, tag = 'smem constant byte address 0x4 - core index']
  #allocation1 [shape = 'u32[144,128]{1,0:T(1,128)}', space=vmem, size = 0x12000, scoped, tag = 'internal scratch']
  %s0 = inlined_call_operand.hbm [shape: f32[512,128], index: 0, kind: input, shape index: {}]
  %s1 = inlined_call_operand.hbm [shape: f32[1,512], index: 1, kind: input, shape index: {}]
  %s2 = inlined_call_operand.vmem [shape: f32[1,512], index: 2, kind: input, shape index: {}]
  %s3 = inlined_call_operand.vmem [shape: f32[1,512], index: 3, kind: input, shape index: {}]
  %s4 = inlined_call_operand.hbm [shape: f32[2,1,512], index: 4, kind: output, shape index: {}]
  %s5 = sld [smem:[#allocation0]]
  $region61: #{tpu_custom_call.1} parent=0
    _
  %s7 = ssub.s32 1, %s5
  %s8 = scalar_select 0, %s7, %s5
  $region1: #{tpu_custom_call.1} parent=0
    #allocation2 [shape = 'u8[262144]{0}', space=vmem, size = 0x40000, scoped, tag = 'input window, operand 0']
    #allocation3 [shape = 's32[2]{0}', space=sflag, size = 0x8, scoped, tag = 'scoped memory for tpu_custom_call.1']
    #allocation4 [shape = 's32[2]{0}', space=sflag, size = 0x8, scoped, tag = 'scoped memory for tpu_custom_call.1']
    #allocation5 [shape = 'u8[2048]{0}', space=vmem, size = 0x800, scoped, tag = 'input window, operand 1']
    #allocation6 [shape = 's32[2]{0}', space=sflag, size = 0x8, scoped, tag = 'scoped memory for tpu_custom_call.1']
    #allocation7 [shape = 'u8[4096]{0}', space=vmem, size = 0x1000, scoped, tag = 'output window, operand 0']
    %9 = vsyncpa [#allocation3], 0
    %s10 = scalar_lea.sflag [#allocation3], 1
    %11 = vsyncpa %s10, 0
    %12 = vsyncpa [#allocation6], 0
    %s13 = scalar_lea.sflag [#allocation6], 1
    %14 = vsyncpa %s13, 0
    %15 = vsyncpa [#allocation4], 0
    %s16 = scalar_lea.sflag [#allocation4], 1
    %17 = vsyncpa %s16, 0
    loop: start=0, step=1, limit=4
    $region2: #{tpu_custom_call.1} parent=1 // loop_pre_header
      _
    $region3: #{tpu_custom_call.1} parent=1 // loop_header
      %s19 = sphi 0, %s23
      %p20 = scmp.ge.s32.totalorder %s19, 4
      %s26 = sphi 0, %s38
      %s27 = sphi 0, %s34
      %s28 = sphi 0, %s26
      %s29 = sphi 0, %s27
      %s30 = sphi 0, %s28
      %s31 = sphi 0, %s29
      %s41 = sphi 0, %s43
      %s44 = sphi 0, %s41
      %s45 = sphi 0, %s44
      %s61 = sphi 0, %s45
      %s67 = sphi 0, %s69
      %s70 = sphi 0, %s67
      %s71 = sphi 0, %s70
      %s87 = sphi 0, %s71
      %s93 = sphi 0, %s95
      %s96 = sphi 0, %s93
      %s97 = sphi 0, %s96
      %s113 = sphi 0, %s97
      %s119 = sphi 0, %s121
      %s122 = sphi 0, %s119
      %s123 = sphi 0, %s122
      %s139 = sphi 0, %s123
      %s145 = sphi 0, %s147
      %s148 = sphi 0, %s145
      %s149 = sphi 0, %s148
      %s165 = sphi 0, %s149
    $region4: #{tpu_custom_call.1} parent=1 // loop_header_branch
      %22 = sbr.rel (%p20) target = $region8
    $region5: #{tpu_custom_call.1} parent=1 // loop_body
      %s24 = ssub.s32 %s19, 1
      %s25 = ssub.s32 %s19, 2
      %s32 = sadd.s32 1, %s27
      %p33 = scmp.ge.s32.totalorder %s32, 1
      %s34 = scalar_select %p33, 0, %s32
      %s35 = sadd.s32 1, %s26
      %s36 = scalar_select %p33, %s35, %s26
      %p37 = scmp.ge.s32.totalorder %s36, 2
      %s38 = scalar_select %p37, 0, %s36
      %s39 = ssub.s32 %s26, %s38
      %p40 = scmp.eq.s32.totalorder %s39, 0
      %s42 = sadd.s32 %s41, 1
      %s43 = scalar_select %p40, %s41, %s42
      %p46 = pneg %p40
      %p47 = scmp.eq.s32.totalorder %s19, 1
      %p48 = por %p46, %p47
      %p49 = scmp.ne.s32.totalorder %s41, %s44
      %p50 = scmp.eq.s32.totalorder %s19, 0
      %p51 = por %p49, %p50
      %p52 = scmp.ne.s32.totalorder %s41, %s44
      %p53 = scmp.eq.s32.totalorder %s24, 1
      %p54 = por %p52, %p53
      %p55 = scmp.ne.s32.totalorder %s44, %s45
      %p56 = scmp.eq.s32.totalorder %s24, 0
      %p57 = por %p55, %p56
      %p58 = scmp.ne.s32.totalorder %s44, %s45
      %p59 = scmp.eq.s32.totalorder %s25, 1
      %p60 = por %p58, %p59
      %p62 = scmp.ne.s32.totalorder %s45, %s61
      %p63 = scmp.eq.s32.totalorder %s25, 0
      %p64 = por %p62, %p63
      %s65 = ssub.s32 %s26, %s38
      %p66 = scmp.eq.s32.totalorder %s65, 0
      %s68 = sadd.s32 %s67, 1
      %s69 = scalar_select %p66, %s67, %s68
      %p72 = pneg %p66
      %p73 = scmp.eq.s32.totalorder %s19, 1
      %p74 = por %p72, %p73
      %p75 = scmp.ne.s32.totalorder %s67, %s70
      %p76 = scmp.eq.s32.totalorder %s19, 0
      %p77 = por %p75, %p76
      %p78 = scmp.ne.s32.totalorder %s67, %s70
      %p79 = scmp.eq.s32.totalorder %s24, 1
      %p80 = por %p78, %p79
      %p81 = scmp.ne.s32.totalorder %s70, %s71
      %p82 = scmp.eq.s32.totalorder %s24, 0
      %p83 = por %p81, %p82
      %p84 = scmp.ne.s32.totalorder %s70, %s71
      %p85 = scmp.eq.s32.totalorder %s25, 1
      %p86 = por %p84, %p85
      %p88 = scmp.ne.s32.totalorder %s71, %s87
      %p89 = scmp.eq.s32.totalorder %s25, 0
      %p90 = por %p88, %p89
      %s91 = ssub.s32 %s27, %s34
      %p92 = scmp.eq.s32.totalorder %s91, 0
      %s94 = sadd.s32 %s93, 1
      %s95 = scalar_select %p92, %s93, %s94
      %p98 = pneg %p92
      %p99 = scmp.eq.s32.totalorder %s19, 1
      %p100 = por %p98, %p99
      %p101 = scmp.ne.s32.totalorder %s93, %s96
      %p102 = scmp.eq.s32.totalorder %s19, 0
      %p103 = por %p101, %p102
      %p104 = scmp.ne.s32.totalorder %s93, %s96
      %p105 = scmp.eq.s32.totalorder %s24, 1
      %p106 = por %p104, %p105
      %p107 = scmp.ne.s32.totalorder %s96, %s97
      %p108 = scmp.eq.s32.totalorder %s24, 0
      %p109 = por %p107, %p108
      %p110 = scmp.ne.s32.totalorder %s96, %s97
      %p111 = scmp.eq.s32.totalorder %s25, 1
      %p112 = por %p110, %p111
      %p114 = scmp.ne.s32.totalorder %s97, %s113
      %p115 = scmp.eq.s32.totalorder %s25, 0
      %p116 = por %p114, %p115
      %s117 = ssub.s32 %s27, %s34
      %p118 = scmp.eq.s32.totalorder %s117, 0
      %s120 = sadd.s32 %s119, 1
      %s121 = scalar_select %p118, %s119, %s120
      %p124 = pneg %p118
      %p125 = scmp.eq.s32.totalorder %s19, 1
      %p126 = por %p124, %p125
      %p127 = scmp.ne.s32.totalorder %s119, %s122
      %p128 = scmp.eq.s32.totalorder %s19, 0
      %p129 = por %p127, %p128
      %p130 = scmp.ne.s32.totalorder %s119, %s122
      %p131 = scmp.eq.s32.totalorder %s24, 1
      %p132 = por %p130, %p131
      %p133 = scmp.ne.s32.totalorder %s122, %s123
      %p134 = scmp.eq.s32.totalorder %s24, 0
      %p135 = por %p133, %p134
      %p136 = scmp.ne.s32.totalorder %s122, %s123
      %p137 = scmp.eq.s32.totalorder %s25, 1
      %p138 = por %p136, %p137
      %p140 = scmp.ne.s32.totalorder %s123, %s139
      %p141 = scmp.eq.s32.totalorder %s25, 0
      %p142 = por %p140, %p141
      %s143 = ssub.s32 %s26, %s38
      %p144 = scmp.eq.s32.totalorder %s143, 0
      %s146 = sadd.s32 %s145, 1
      %s147 = scalar_select %p144, %s145, %s146
      %p150 = pneg %p144
      %p151 = scmp.eq.s32.totalorder %s19, 1
      %p152 = por %p150, %p151
      %p153 = scmp.ne.s32.totalorder %s145, %s148
      %p154 = scmp.eq.s32.totalorder %s19, 0
      %p155 = por %p153, %p154
      %p156 = scmp.ne.s32.totalorder %s145, %s148
      %p157 = scmp.eq.s32.totalorder %s24, 1
      %p158 = por %p156, %p157
      %p159 = scmp.ne.s32.totalorder %s148, %s149
      %p160 = scmp.eq.s32.totalorder %s24, 0
      %p161 = por %p159, %p160
      %p162 = scmp.ne.s32.totalorder %s148, %s149
      %p163 = scmp.eq.s32.totalorder %s25, 1
      %p164 = por %p162, %p163
      %p166 = scmp.ne.s32.totalorder %s149, %s165
      %p167 = scmp.eq.s32.totalorder %s25, 0
      %p168 = por %p166, %p167
      %p169 = scmp.le.s32.totalorder 1, %s19
      %p170 = scmp.lt.s32.totalorder %s19, 3
      %p171 = pnand %p169, %p170
      %p172 = pneg %p171
      // Predicated region
      $region9: #{tpu_custom_call.1} parent=5 // pred_check
        _
      $region10: #{tpu_custom_call.1} parent=5 // pred_check_branch
        %174 = sbr.rel (%p171) target = $region12
      $region11: #{tpu_custom_call.1} parent=5 // pred_region
        %s175 = ssub.s32 %s19, 1
        // Predicated region
        $region13: #{tpu_custom_call.1} parent=11 // pred_check
          %p176 = pneg %p109
        $region14: #{tpu_custom_call.1} parent=11 // pred_check_branch
          %178 = sbr.rel (%p176) target = $region16
        $region15: #{tpu_custom_call.1} parent=11 // pred_region
          %s179 = smul.u32 4, %s29
          %p180 = scmp.lt.s32.totalorder %s179, 3
          %s181 = scalar_select %p180, %s179, 3
          %s182 = scalar_lea.vmem %s2, %s181
          %s183 = smul.u32 4, %s29
        $region16: #{tpu_custom_call.1} parent=11 // pred_fallthru
          _
        // Predicated region
        $region17: #{tpu_custom_call.1} parent=11 // pred_check
          %p184 = pneg %p135
        $region18: #{tpu_custom_call.1} parent=11 // pred_check_branch
          %186 = sbr.rel (%p184) target = $region20
        $region19: #{tpu_custom_call.1} parent=11 // pred_region
          %s187 = smul.u32 4, %s29
          %p188 = scmp.lt.s32.totalorder %s187, 3
          %s189 = scalar_select %p188, %s187, 3
          %s190 = scalar_lea.vmem %s3, %s189
          %s191 = smul.u32 4, %s29
        $region20: #{tpu_custom_call.1} parent=11 // pred_fallthru
          _
      $region12: #{tpu_custom_call.1} parent=5 // pred_fallthru
        _
      %p192 = scmp.lt.s32.totalorder %s19, 2
      // Predicated region
      $region21: #{tpu_custom_call.1} parent=5 // pred_check
        %p193 = pneg %p192
      $region22: #{tpu_custom_call.1} parent=5 // pred_check_branch
        %195 = sbr.rel (%p193) target = $region24
      $region23: #{tpu_custom_call.1} parent=5 // pred_region
        // Predicated region
        $region25: #{tpu_custom_call.1} parent=23 // pred_check
          %p196 = pneg %p51
        $region26: #{tpu_custom_call.1} parent=23 // pred_check_branch
          %198 = sbr.rel (%p196) target = $region28
        $region27: #{tpu_custom_call.1} parent=23 // pred_region
          %s199 = sand.u32 %s41, 1
          %s200 = scalar_lea.sflag [#allocation3], %s199
          %s201 = sand.u32 %s41, 1
          %s202 = smul.addr %s201, 256
          %s203 = scalar_lea.vmem [#allocation2], %s202
          %s204 = smul.u32 32, %s26
          %s206 = ssub.s32 4096, 4096
          %207 = vsyncadd %s200, %s206
          %s208 = smul.addr %s204, 128
          %s209 = scalar_lea.hbm %s0, %s208
          %s210 = sshll.u32 %s203, 4
          %s211 = int_to_ptr.vmem [resolvable:$true] %s210
          %216 = dma.hbm_to_vmem [thread:$0]  %s209, 4096, %s211, %s200, 128, 128, 8
        $region28: #{tpu_custom_call.1} parent=23 // pred_fallthru
          _
        // Predicated region
        $region29: #{tpu_custom_call.1} parent=23 // pred_check
          %p217 = pneg %p77
        $region30: #{tpu_custom_call.1} parent=23 // pred_check_branch
          %219 = sbr.rel (%p217) target = $region32
        $region31: #{tpu_custom_call.1} parent=23 // pred_region
          %s220 = sand.u32 %s67, 1
          %s221 = scalar_lea.sflag [#allocation6], %s220
          %s222 = sand.u32 %s67, 1
          %s223 = smul.addr %s222, 2
          %s224 = scalar_lea.vmem [#allocation5], %s223
          %s225 = smul.u32 2, %s26
          %s227 = ssub.s32 32, 32
          %228 = vsyncadd %s221, %s227
          %s229 = smul.addr %s225, 16
          %s230 = scalar_lea.hbm %s1, %s229
          %s232 = sshll.u32 %s224, 4
          %s233 = int_to_ptr.vmem [resolvable:$true] %s232
          %235 = dma.hbm_to_vmem [thread:$0]  %s230, 32, %s233, %s221
        $region32: #{tpu_custom_call.1} parent=23 // pred_fallthru
          _
      $region24: #{tpu_custom_call.1} parent=5 // pred_fallthru
        _
      %p236 = scmp.le.s32.totalorder 1, %s19
      %p237 = scmp.lt.s32.totalorder %s19, 3
      %p238 = pnand %p236, %p237
      %p239 = pneg %p238
      // Predicated region
      $region33: #{tpu_custom_call.1} parent=5 // pred_check
        _
      $region34: #{tpu_custom_call.1} parent=5 // pred_check_branch
        %241 = sbr.rel (%p238) target = $region36
      $region35: #{tpu_custom_call.1} parent=5 // pred_region
        %s242 = ssub.s32 %s19, 1
        %s243 = sand.u32 %s44, 1
        %s244 = scalar_lea.sflag [#allocation3], %s243
        %s245 = sand.u32 %s44, 1
        %s246 = smul.addr %s245, 256
        %s247 = scalar_lea.vmem [#allocation2], %s246
        // Predicated region
        $region37: #{tpu_custom_call.1} parent=35 // pred_check
          %p248 = pneg %p57
        $region38: #{tpu_custom_call.1} parent=35 // pred_check_branch
          %250 = sbr.rel (%p248) target = $region40
        $region39: #{tpu_custom_call.1} parent=35 // pred_region
          %251 = dma.done %s244, 4096
        $region40: #{tpu_custom_call.1} parent=35 // pred_fallthru
          _
        %s252 = sand.u32 %s70, 1
        %s253 = scalar_lea.sflag [#allocation6], %s252
        %s254 = sand.u32 %s70, 1
        %s255 = smul.addr %s254, 2
        %s256 = scalar_lea.vmem [#allocation5], %s255
        // Predicated region
        $region41: #{tpu_custom_call.1} parent=35 // pred_check
          %p257 = pneg %p83
        $region42: #{tpu_custom_call.1} parent=35 // pred_check_branch
          %259 = sbr.rel (%p257) target = $region44
        $region43: #{tpu_custom_call.1} parent=35 // pred_region
          %260 = dma.done %s253, 32
        $region44: #{tpu_custom_call.1} parent=35 // pred_fallthru
          _
        %s261 = sand.u32 %s44, 1
        %s262 = scalar_lea.sflag [#allocation3], %s261
        %s263 = sand.u32 %s44, 1
        %s264 = smul.addr %s263, 256
        %s265 = scalar_lea.vmem [#allocation2], %s264
        %p266 = pneg %p57
        %p267 = pneg %p54
        %s268 = sand.u32 %s70, 1
        %s269 = scalar_lea.sflag [#allocation6], %s268
        %s270 = sand.u32 %s70, 1
        %s271 = smul.addr %s270, 2
        %s272 = scalar_lea.vmem [#allocation5], %s271
        %p273 = pneg %p83
        %p274 = pneg %p80
        %s275 = smul.u32 4, %s29
        %p276 = scmp.lt.s32.totalorder %s275, 3
        %s277 = scalar_select %p276, %s275, 3
        %s278 = scalar_lea.vmem %s2, %s277
        %p279 = pneg %p109
        %p280 = pneg %p106
        %s281 = smul.u32 4, %s29
        %p282 = scmp.lt.s32.totalorder %s281, 3
        %s283 = scalar_select %p282, %s281, 3
        %s284 = scalar_lea.vmem %s3, %s283
        %p285 = pneg %p135
        %p286 = pneg %p132
        %p287 = pneg %p161
        %p288 = pneg %p158
        %s289 = sand.u32 %s148, 1
        %s290 = scalar_lea.sflag [#allocation4], %s289
        %s291 = sand.u32 %s148, 1
        %s292 = smul.addr %s291, 4
        %s293 = scalar_lea.vmem [#allocation7], %s292
        %s294 = smul.u32 32, %s28
        %s295 = smul.u32 2, %s28
        %s296 = smul.u32 4, %s29
        %p297 = scmp.lt.s32.totalorder %s296, 3
        %s298 = scalar_select %p297, %s296, 3
        %s299 = scalar_lea.vmem %s2, %s298
        %s300 = smul.u32 4, %s29
        %s301 = smul.u32 4, %s29
        %p302 = scmp.lt.s32.totalorder %s301, 3
        %s303 = scalar_select %p302, %s301, 3
        %s304 = scalar_lea.vmem %s3, %s303
        %s305 = smul.u32 4, %s29
        %p306 = scmp.eq.s32.totalorder %s29, 0
        // Predicated region
        $region45: #{tpu_custom_call.1} parent=35 // pred_check
          %p307 = pneg %p306
        $region46: #{tpu_custom_call.1} parent=35 // pred_check_branch
          %309 = sbr.rel (%p307) target = $region48
        $region47: #{tpu_custom_call.1} parent=35 // pred_region
          %v310 = vlaneseq
          %vm311 = vcmp.ge.s32.totalorder %v310, 0
          %vm312 = vcmp.lt.s32.totalorder %v310, 512
          %vm313 = vmand %vm311, %vm312
          %314 = vst.msk [vmem:[%s293] sm:$0xf] %vm313, 0.0
        $region48: #{tpu_custom_call.1} parent=35 // pred_fallthru
          _
        %v315 = vld [vmem:[%s247] sm:$0xff]
        %v316 = vld [vmem:[%s247 + $0x8] sm:$0xff]
        %v317 = vld [vmem:[%s247 + $0x10] sm:$0xff]
        %v318 = vld [vmem:[%s247 + $0x18] sm:$0xff]
        %v319 = vld [vmem:[%s247 + $0x20] sm:$0xff]
        %v320 = vld [vmem:[%s247 + $0x28] sm:$0xff]
        %v321 = vld [vmem:[%s247 + $0x30] sm:$0xff]
        %v322 = vld [vmem:[%s247 + $0x38] sm:$0xff]
        %v323 = vld [vmem:[%s247 + $0x40] sm:$0xff]
        %v324 = vld [vmem:[%s247 + $0x48] sm:$0xff]
        %v325 = vld [vmem:[%s247 + $0x50] sm:$0xff]
        %v326 = vld [vmem:[%s247 + $0x58] sm:$0xff]
        %v327 = vld [vmem:[%s247 + $0x60] sm:$0xff]
        %v328 = vld [vmem:[%s247 + $0x68] sm:$0xff]
        %v329 = vld [vmem:[%s247 + $0x70] sm:$0xff]
        %v330 = vld [vmem:[%s247 + $0x78] sm:$0xff]
        %v331 = vld [vmem:[%s247 + $0x80] sm:$0xff]
        %v332 = vld [vmem:[%s247 + $0x88] sm:$0xff]
        %v333 = vld [vmem:[%s247 + $0x90] sm:$0xff]
        %v334 = vld [vmem:[%s247 + $0x98] sm:$0xff]
        %v335 = vld [vmem:[%s247 + $0xa0] sm:$0xff]
        %v336 = vld [vmem:[%s247 + $0xa8] sm:$0xff]
        %v337 = vld [vmem:[%s247 + $0xb0] sm:$0xff]
        %v338 = vld [vmem:[%s247 + $0xb8] sm:$0xff]
        %v339 = vld [vmem:[%s247 + $0xc0] sm:$0xff]
        %v340 = vld [vmem:[%s247 + $0xc8] sm:$0xff]
        %v341 = vld [vmem:[%s247 + $0xd0] sm:$0xff]
        %v342 = vld [vmem:[%s247 + $0xd8] sm:$0xff]
        %v343 = vld [vmem:[%s247 + $0xe0] sm:$0xff]
        %v344 = vld [vmem:[%s247 + $0xe8] sm:$0xff]
        %v345 = vld [vmem:[%s247 + $0xf0] sm:$0xff]
        %v346 = vld [vmem:[%s247 + $0xf8] sm:$0xff]
        %v347 = vld [vmem:[%s299] sm:$0xf]
        %v348 = vld [vmem:[%s256] sm:$0x3]
        %v349 = vld [vmem:[%s304] sm:$0xf]
        %v351 = vlaneseq
        %v352 = vshrl.u32 %v351, 7
        %v353 = vsub.s32 0, %v352
        %v354 = vrot.slane %v347, %v353
        %v355 = vlaneseq
        %v356 = vshrl.u32 %v355, 7
        %v357 = vsub.s32 1, %v356
        %v358 = vrot.slane %v347, %v357
        %v359 = vlaneseq
        %v360 = vshrl.u32 %v359, 7
        %v361 = vsub.s32 2, %v360
        %v362 = vrot.slane %v347, %v361
        %v363 = vlaneseq
        %v364 = vshrl.u32 %v363, 7
        %v365 = vsub.s32 3, %v364
        %v366 = vrot.slane %v347, %v365
        %372 = vset.pattern.permute.xlu0 0
        %373 = vperm.xlu0 %372, %v315
        %v374 = vpop.permute.xlu0 %373
        %377 = vset.pattern.permute.xlu0 0
        %378 = vperm.xlu0 %377, %v316
        %v379 = vpop.permute.xlu0 %378
        %382 = vset.pattern.permute.xlu0 0
        %383 = vperm.xlu0 %382, %v317
        %v384 = vpop.permute.xlu0 %383
        %387 = vset.pattern.permute.xlu0 0
        %388 = vperm.xlu0 %387, %v318
        %v389 = vpop.permute.xlu0 %388
        %392 = vset.pattern.permute.xlu0 0
        %393 = vperm.xlu0 %392, %v319
        %v394 = vpop.permute.xlu0 %393
        %397 = vset.pattern.permute.xlu0 0
        %398 = vperm.xlu0 %397, %v320
        %v399 = vpop.permute.xlu0 %398
        %402 = vset.pattern.permute.xlu0 0
        %403 = vperm.xlu0 %402, %v321
        %v404 = vpop.permute.xlu0 %403
        %407 = vset.pattern.permute.xlu0 0
        %408 = vperm.xlu0 %407, %v322
        %v409 = vpop.permute.xlu0 %408
        %412 = vset.pattern.permute.xlu0 0
        %413 = vperm.xlu0 %412, %v323
        %v414 = vpop.permute.xlu0 %413
        %417 = vset.pattern.permute.xlu0 0
        %418 = vperm.xlu0 %417, %v324
        %v419 = vpop.permute.xlu0 %418
        %422 = vset.pattern.permute.xlu0 0
        %423 = vperm.xlu0 %422, %v325
        %v424 = vpop.permute.xlu0 %423
        %427 = vset.pattern.permute.xlu0 0
        %428 = vperm.xlu0 %427, %v326
        %v429 = vpop.permute.xlu0 %428
        %432 = vset.pattern.permute.xlu0 0
        %433 = vperm.xlu0 %432, %v327
        %v434 = vpop.permute.xlu0 %433
        %437 = vset.pattern.permute.xlu0 0
        %438 = vperm.xlu0 %437, %v328
        %v439 = vpop.permute.xlu0 %438
        %442 = vset.pattern.permute.xlu0 0
        %443 = vperm.xlu0 %442, %v329
        %v444 = vpop.permute.xlu0 %443
        %447 = vset.pattern.permute.xlu0 0
        %448 = vperm.xlu0 %447, %v330
        %v449 = vpop.permute.xlu0 %448
        %452 = vset.pattern.permute.xlu0 0
        %453 = vperm.xlu0 %452, %v331
        %v454 = vpop.permute.xlu0 %453
        %457 = vset.pattern.permute.xlu0 0
        %458 = vperm.xlu0 %457, %v332
        %v459 = vpop.permute.xlu0 %458
        %462 = vset.pattern.permute.xlu0 0
        %463 = vperm.xlu0 %462, %v333
        %v464 = vpop.permute.xlu0 %463
        %467 = vset.pattern.permute.xlu0 0
        %468 = vperm.xlu0 %467, %v334
        %v469 = vpop.permute.xlu0 %468
        %472 = vset.pattern.permute.xlu0 0
        %473 = vperm.xlu0 %472, %v335
        %v474 = vpop.permute.xlu0 %473
        %477 = vset.pattern.permute.xlu0 0
        %478 = vperm.xlu0 %477, %v336
        %v479 = vpop.permute.xlu0 %478
        %482 = vset.pattern.permute.xlu0 0
        %483 = vperm.xlu0 %482, %v337
        %v484 = vpop.permute.xlu0 %483
        %487 = vset.pattern.permute.xlu0 0
        %488 = vperm.xlu0 %487, %v338
        %v489 = vpop.permute.xlu0 %488
        %492 = vset.pattern.permute.xlu0 0
        %493 = vperm.xlu0 %492, %v339
        %v494 = vpop.permute.xlu0 %493
        %497 = vset.pattern.permute.xlu0 0
        %498 = vperm.xlu0 %497, %v340
        %v499 = vpop.permute.xlu0 %498
        %502 = vset.pattern.permute.xlu0 0
        %503 = vperm.xlu0 %502, %v341
        %v504 = vpop.permute.xlu0 %503
        %507 = vset.pattern.permute.xlu0 0
        %508 = vperm.xlu0 %507, %v342
        %v509 = vpop.permute.xlu0 %508
        %512 = vset.pattern.permute.xlu0 0
        %513 = vperm.xlu0 %512, %v343
        %v514 = vpop.permute.xlu0 %513
        %517 = vset.pattern.permute.xlu0 0
        %518 = vperm.xlu0 %517, %v344
        %v519 = vpop.permute.xlu0 %518
        %522 = vset.pattern.permute.xlu0 0
        %523 = vperm.xlu0 %522, %v345
        %v524 = vpop.permute.xlu0 %523
        %527 = vset.pattern.permute.xlu0 0
        %528 = vperm.xlu0 %527, %v346
        %v529 = vpop.permute.xlu0 %528
        %v531 = vsub.f32 %v354, %v374
        %v532 = vsub.f32 %v358, %v374
        %v533 = vsub.f32 %v362, %v374
        %v534 = vsub.f32 %v366, %v374
        %v535 = vsub.f32 %v354, %v379
        %v536 = vsub.f32 %v358, %v379
        %v537 = vsub.f32 %v362, %v379
        %v538 = vsub.f32 %v366, %v379
        %v539 = vsub.f32 %v354, %v384
        %v540 = vsub.f32 %v358, %v384
        %v541 = vsub.f32 %v362, %v384
        %v542 = vsub.f32 %v366, %v384
        %v543 = vsub.f32 %v354, %v389
        %v544 = vsub.f32 %v358, %v389
        %v545 = vsub.f32 %v362, %v389
        %v546 = vsub.f32 %v366, %v389
        %v547 = vsub.f32 %v354, %v394
        %v548 = vsub.f32 %v358, %v394
        %v549 = vsub.f32 %v362, %v394
        %v550 = vsub.f32 %v366, %v394
        %v551 = vsub.f32 %v354, %v399
        %v552 = vsub.f32 %v358, %v399
        %v553 = vsub.f32 %v362, %v399
        %v554 = vsub.f32 %v366, %v399
        %v555 = vsub.f32 %v354, %v404
        %v556 = vsub.f32 %v358, %v404
        %v557 = vsub.f32 %v362, %v404
        %v558 = vsub.f32 %v366, %v404
        %v559 = vsub.f32 %v354, %v409
        %v560 = vsub.f32 %v358, %v409
        %v561 = vsub.f32 %v362, %v409
        %v562 = vsub.f32 %v366, %v409
        %v563 = vsub.f32 %v354, %v414
        %v564 = vsub.f32 %v358, %v414
        %v565 = vsub.f32 %v362, %v414
        %v566 = vsub.f32 %v366, %v414
        %v567 = vsub.f32 %v354, %v419
        %v568 = vsub.f32 %v358, %v419
        %v569 = vsub.f32 %v362, %v419
        %v570 = vsub.f32 %v366, %v419
        %v571 = vsub.f32 %v354, %v424
        %v572 = vsub.f32 %v358, %v424
        %v573 = vsub.f32 %v362, %v424
        %v574 = vsub.f32 %v366, %v424
        %v575 = vsub.f32 %v354, %v429
        %v576 = vsub.f32 %v358, %v429
        %v577 = vsub.f32 %v362, %v429
        %v578 = vsub.f32 %v366, %v429
        %v579 = vsub.f32 %v354, %v434
        %v580 = vsub.f32 %v358, %v434
        %v581 = vsub.f32 %v362, %v434
        %v582 = vsub.f32 %v366, %v434
        %v583 = vsub.f32 %v354, %v439
        %v584 = vsub.f32 %v358, %v439
        %v585 = vsub.f32 %v362, %v439
        %v586 = vsub.f32 %v366, %v439
        %v587 = vsub.f32 %v354, %v444
        %v588 = vsub.f32 %v358, %v444
        %v589 = vsub.f32 %v362, %v444
        %v590 = vsub.f32 %v366, %v444
        %v591 = vsub.f32 %v354, %v449
        %v592 = vsub.f32 %v358, %v449
        %v593 = vsub.f32 %v362, %v449
        %v594 = vsub.f32 %v366, %v449
        %v595 = vsub.f32 %v354, %v454
        %v596 = vsub.f32 %v358, %v454
        %v597 = vsub.f32 %v362, %v454
        %v598 = vsub.f32 %v366, %v454
        %v599 = vsub.f32 %v354, %v459
        %v600 = vsub.f32 %v358, %v459
        %v601 = vsub.f32 %v362, %v459
        %v602 = vsub.f32 %v366, %v459
        %v603 = vsub.f32 %v354, %v464
        %v604 = vsub.f32 %v358, %v464
        %v605 = vsub.f32 %v362, %v464
        %v606 = vsub.f32 %v366, %v464
        %v607 = vsub.f32 %v354, %v469
        %v608 = vsub.f32 %v358, %v469
        %v609 = vsub.f32 %v362, %v469
        %v610 = vsub.f32 %v366, %v469
        %v611 = vsub.f32 %v354, %v474
        %v612 = vsub.f32 %v358, %v474
        %v613 = vsub.f32 %v362, %v474
        %v614 = vsub.f32 %v366, %v474
        %v615 = vsub.f32 %v354, %v479
        %v616 = vsub.f32 %v358, %v479
        %v617 = vsub.f32 %v362, %v479
        %v618 = vsub.f32 %v366, %v479
        %v619 = vsub.f32 %v354, %v484
        %v620 = vsub.f32 %v358, %v484
        %v621 = vsub.f32 %v362, %v484
        %v622 = vsub.f32 %v366, %v484
        %v623 = vsub.f32 %v354, %v489
        %v624 = vsub.f32 %v358, %v489
        %v625 = vsub.f32 %v362, %v489
        %v626 = vsub.f32 %v366, %v489
        %v627 = vsub.f32 %v354, %v494
        %v628 = vsub.f32 %v358, %v494
        %v629 = vsub.f32 %v362, %v494
        %v630 = vsub.f32 %v366, %v494
        %v631 = vsub.f32 %v354, %v499
        %v632 = vsub.f32 %v358, %v499
        %v633 = vsub.f32 %v362, %v499
        %v634 = vsub.f32 %v366, %v499
        %v635 = vsub.f32 %v354, %v504
        %v636 = vsub.f32 %v358, %v504
        %v637 = vsub.f32 %v362, %v504
        %v638 = vsub.f32 %v366, %v504
        %v639 = vsub.f32 %v354, %v509
        %v640 = vsub.f32 %v358, %v509
        %v641 = vsub.f32 %v362, %v509
        %v642 = vsub.f32 %v366, %v509
        %v643 = vsub.f32 %v354, %v514
        %v644 = vsub.f32 %v358, %v514
        %v645 = vsub.f32 %v362, %v514
        %v646 = vsub.f32 %v366, %v514
        %v647 = vsub.f32 %v354, %v519
        %v648 = vsub.f32 %v358, %v519
        %v649 = vsub.f32 %v362, %v519
        %v650 = vsub.f32 %v366, %v519
        %v651 = vsub.f32 %v354, %v524
        %v652 = vsub.f32 %v358, %v524
        %v653 = vsub.f32 %v362, %v524
        %v654 = vsub.f32 %v366, %v524
        %v655 = vsub.f32 %v354, %v529
        %v656 = vsub.f32 %v358, %v529
        %v657 = vsub.f32 %v362, %v529
        %v658 = vsub.f32 %v366, %v529
        %v659 = vmax.f32 %v531, 0.0
        %v660 = vmax.f32 %v532, 0.0
        %v661 = vmax.f32 %v533, 0.0
        %v662 = vmax.f32 %v534, 0.0
        %v663 = vmax.f32 %v535, 0.0
        %v664 = vmax.f32 %v536, 0.0
        %v665 = vmax.f32 %v537, 0.0
        %v666 = vmax.f32 %v538, 0.0
        %v667 = vmax.f32 %v539, 0.0
        %v668 = vmax.f32 %v540, 0.0
        %v669 = vmax.f32 %v541, 0.0
        %v670 = vmax.f32 %v542, 0.0
        %v671 = vmax.f32 %v543, 0.0
        %v672 = vmax.f32 %v544, 0.0
        %v673 = vmax.f32 %v545, 0.0
        %v674 = vmax.f32 %v546, 0.0
        %v675 = vmax.f32 %v547, 0.0
        %v676 = vmax.f32 %v548, 0.0
        %v677 = vmax.f32 %v549, 0.0
        %v678 = vmax.f32 %v550, 0.0
        %v679 = vmax.f32 %v551, 0.0
        %v680 = vmax.f32 %v552, 0.0
        %v681 = vmax.f32 %v553, 0.0
        %v682 = vmax.f32 %v554, 0.0
        %v683 = vmax.f32 %v555, 0.0
        %v684 = vmax.f32 %v556, 0.0
        %v685 = vmax.f32 %v557, 0.0
        %v686 = vmax.f32 %v558, 0.0
        %v687 = vmax.f32 %v559, 0.0
        %v688 = vmax.f32 %v560, 0.0
        %v689 = vmax.f32 %v561, 0.0
        %v690 = vmax.f32 %v562, 0.0
        %v691 = vmax.f32 %v563, 0.0
        %v692 = vmax.f32 %v564, 0.0
        %v693 = vmax.f32 %v565, 0.0
        %v694 = vmax.f32 %v566, 0.0
        %v695 = vmax.f32 %v567, 0.0
        %v696 = vmax.f32 %v568, 0.0
        %v697 = vmax.f32 %v569, 0.0
        %v698 = vmax.f32 %v570, 0.0
        %v699 = vmax.f32 %v571, 0.0
        %v700 = vmax.f32 %v572, 0.0
        %v701 = vmax.f32 %v573, 0.0
        %v702 = vmax.f32 %v574, 0.0
        %v703 = vmax.f32 %v575, 0.0
        %v704 = vmax.f32 %v576, 0.0
        %v705 = vmax.f32 %v577, 0.0
        %v706 = vmax.f32 %v578, 0.0
        %v707 = vmax.f32 %v579, 0.0
        %v708 = vmax.f32 %v580, 0.0
        %v709 = vmax.f32 %v581, 0.0
        %v710 = vmax.f32 %v582, 0.0
        %v711 = vmax.f32 %v583, 0.0
        %v712 = vmax.f32 %v584, 0.0
        %v713 = vmax.f32 %v585, 0.0
        %v714 = vmax.f32 %v586, 0.0
        %v715 = vmax.f32 %v587, 0.0
        %v716 = vmax.f32 %v588, 0.0
        %v717 = vmax.f32 %v589, 0.0
        %v718 = vmax.f32 %v590, 0.0
        %v719 = vmax.f32 %v591, 0.0
        %v720 = vmax.f32 %v592, 0.0
        %v721 = vmax.f32 %v593, 0.0
        %v722 = vmax.f32 %v594, 0.0
        %v723 = vmax.f32 %v595, 0.0
        %v724 = vmax.f32 %v596, 0.0
        %v725 = vmax.f32 %v597, 0.0
        %v726 = vmax.f32 %v598, 0.0
        %v727 = vmax.f32 %v599, 0.0
        %v728 = vmax.f32 %v600, 0.0
        %v729 = vmax.f32 %v601, 0.0
        %v730 = vmax.f32 %v602, 0.0
        %v731 = vmax.f32 %v603, 0.0
        %v732 = vmax.f32 %v604, 0.0
        %v733 = vmax.f32 %v605, 0.0
        %v734 = vmax.f32 %v606, 0.0
        %v735 = vmax.f32 %v607, 0.0
        %v736 = vmax.f32 %v608, 0.0
        %v737 = vmax.f32 %v609, 0.0
        %v738 = vmax.f32 %v610, 0.0
        %v739 = vmax.f32 %v611, 0.0
        %v740 = vmax.f32 %v612, 0.0
        %v741 = vmax.f32 %v613, 0.0
        %v742 = vmax.f32 %v614, 0.0
        %v743 = vmax.f32 %v615, 0.0
        %v744 = vmax.f32 %v616, 0.0
        %v745 = vmax.f32 %v617, 0.0
        %v746 = vmax.f32 %v618, 0.0
        %v747 = vmax.f32 %v619, 0.0
        %v748 = vmax.f32 %v620, 0.0
        %v749 = vmax.f32 %v621, 0.0
        %v750 = vmax.f32 %v622, 0.0
        %v751 = vmax.f32 %v623, 0.0
        %v752 = vmax.f32 %v624, 0.0
        %v753 = vmax.f32 %v625, 0.0
        %v754 = vmax.f32 %v626, 0.0
        %v755 = vmax.f32 %v627, 0.0
        %v756 = vmax.f32 %v628, 0.0
        %v757 = vmax.f32 %v629, 0.0
        %v758 = vmax.f32 %v630, 0.0
        %v759 = vmax.f32 %v631, 0.0
        %v760 = vmax.f32 %v632, 0.0
        %v761 = vmax.f32 %v633, 0.0
        %v762 = vmax.f32 %v634, 0.0
        %v763 = vmax.f32 %v635, 0.0
        %v764 = vmax.f32 %v636, 0.0
        %v765 = vmax.f32 %v637, 0.0
        %v766 = vmax.f32 %v638, 0.0
        %v767 = vmax.f32 %v639, 0.0
        %v768 = vmax.f32 %v640, 0.0
        %v769 = vmax.f32 %v641, 0.0
        %v770 = vmax.f32 %v642, 0.0
        %v771 = vmax.f32 %v643, 0.0
        %v772 = vmax.f32 %v644, 0.0
        %v773 = vmax.f32 %v645, 0.0
        %v774 = vmax.f32 %v646, 0.0
        %v775 = vmax.f32 %v647, 0.0
        %v776 = vmax.f32 %v648, 0.0
        %v777 = vmax.f32 %v649, 0.0
        %v778 = vmax.f32 %v650, 0.0
        %v779 = vmax.f32 %v651, 0.0
        %v780 = vmax.f32 %v652, 0.0
        %v781 = vmax.f32 %v653, 0.0
        %v782 = vmax.f32 %v654, 0.0
        %v783 = vmax.f32 %v655, 0.0
        %v784 = vmax.f32 %v656, 0.0
        %v785 = vmax.f32 %v657, 0.0
        %v786 = vmax.f32 %v658, 0.0
        %v787 = vand.u32 2147483647, %v531
        %v788 = vand.u32 2147483647, %v532
        %v789 = vand.u32 2147483647, %v533
        %v790 = vand.u32 2147483647, %v534
        %v791 = vand.u32 2147483647, %v535
        %v792 = vand.u32 2147483647, %v536
        %v793 = vand.u32 2147483647, %v537
        %v794 = vand.u32 2147483647, %v538
        %v795 = vand.u32 2147483647, %v539
        %v796 = vand.u32 2147483647, %v540
        %v797 = vand.u32 2147483647, %v541
        %v798 = vand.u32 2147483647, %v542
        %v799 = vand.u32 2147483647, %v543
        %v800 = vand.u32 2147483647, %v544
        %v801 = vand.u32 2147483647, %v545
        %v802 = vand.u32 2147483647, %v546
        %v803 = vand.u32 2147483647, %v547
        %v804 = vand.u32 2147483647, %v548
        %v805 = vand.u32 2147483647, %v549
        %v806 = vand.u32 2147483647, %v550
        %v807 = vand.u32 2147483647, %v551
        %v808 = vand.u32 2147483647, %v552
        %v809 = vand.u32 2147483647, %v553
        %v810 = vand.u32 2147483647, %v554
        %v811 = vand.u32 2147483647, %v555
        %v812 = vand.u32 2147483647, %v556
        %v813 = vand.u32 2147483647, %v557
        %v814 = vand.u32 2147483647, %v558
        %v815 = vand.u32 2147483647, %v559
        %v816 = vand.u32 2147483647, %v560
        %v817 = vand.u32 2147483647, %v561
        %v818 = vand.u32 2147483647, %v562
        %v819 = vand.u32 2147483647, %v563
        %v820 = vand.u32 2147483647, %v564
        %v821 = vand.u32 2147483647, %v565
        %v822 = vand.u32 2147483647, %v566
        %v823 = vand.u32 2147483647, %v567
        %v824 = vand.u32 2147483647, %v568
        %v825 = vand.u32 2147483647, %v569
        %v826 = vand.u32 2147483647, %v570
        %v827 = vand.u32 2147483647, %v571
        %v828 = vand.u32 2147483647, %v572
        %v829 = vand.u32 2147483647, %v573
        %v830 = vand.u32 2147483647, %v574
        %v831 = vand.u32 2147483647, %v575
        %v832 = vand.u32 2147483647, %v576
        %v833 = vand.u32 2147483647, %v577
        %v834 = vand.u32 2147483647, %v578
        %v835 = vand.u32 2147483647, %v579
        %v836 = vand.u32 2147483647, %v580
        %v837 = vand.u32 2147483647, %v581
        %v838 = vand.u32 2147483647, %v582
        %v839 = vand.u32 2147483647, %v583
        %v840 = vand.u32 2147483647, %v584
        %v841 = vand.u32 2147483647, %v585
        %v842 = vand.u32 2147483647, %v586
        %v843 = vand.u32 2147483647, %v587
        %v844 = vand.u32 2147483647, %v588
        %v845 = vand.u32 2147483647, %v589
        %v846 = vand.u32 2147483647, %v590
        %v847 = vand.u32 2147483647, %v591
        %v848 = vand.u32 2147483647, %v592
        %v849 = vand.u32 2147483647, %v593
        %v850 = vand.u32 2147483647, %v594
        %v851 = vand.u32 2147483647, %v595
        %v852 = vand.u32 2147483647, %v596
        %v853 = vand.u32 2147483647, %v597
        %v854 = vand.u32 2147483647, %v598
        %v855 = vand.u32 2147483647, %v599
        %v856 = vand.u32 2147483647, %v600
        %v857 = vand.u32 2147483647, %v601
        %v858 = vand.u32 2147483647, %v602
        %v859 = vand.u32 2147483647, %v603
        %v860 = vand.u32 2147483647, %v604
        %v861 = vand.u32 2147483647, %v605
        %v862 = vand.u32 2147483647, %v606
        %v863 = vand.u32 2147483647, %v607
        %v864 = vand.u32 2147483647, %v608
        %v865 = vand.u32 2147483647, %v609
        %v866 = vand.u32 2147483647, %v610
        %v867 = vand.u32 2147483647, %v611
        %v868 = vand.u32 2147483647, %v612
        %v869 = vand.u32 2147483647, %v613
        %v870 = vand.u32 2147483647, %v614
        %v871 = vand.u32 2147483647, %v615
        %v872 = vand.u32 2147483647, %v616
        %v873 = vand.u32 2147483647, %v617
        %v874 = vand.u32 2147483647, %v618
        %v875 = vand.u32 2147483647, %v619
        %v876 = vand.u32 2147483647, %v620
        %v877 = vand.u32 2147483647, %v621
        %v878 = vand.u32 2147483647, %v622
        %v879 = vand.u32 2147483647, %v623
        %v880 = vand.u32 2147483647, %v624
        %v881 = vand.u32 2147483647, %v625
        %v882 = vand.u32 2147483647, %v626
        %v883 = vand.u32 2147483647, %v627
        %v884 = vand.u32 2147483647, %v628
        %v885 = vand.u32 2147483647, %v629
        %v886 = vand.u32 2147483647, %v630
        %v887 = vand.u32 2147483647, %v631
        %v888 = vand.u32 2147483647, %v632
        %v889 = vand.u32 2147483647, %v633
        %v890 = vand.u32 2147483647, %v634
        %v891 = vand.u32 2147483647, %v635
        %v892 = vand.u32 2147483647, %v636
        %v893 = vand.u32 2147483647, %v637
        %v894 = vand.u32 2147483647, %v638
        %v895 = vand.u32 2147483647, %v639
        %v896 = vand.u32 2147483647, %v640
        %v897 = vand.u32 2147483647, %v641
        %v898 = vand.u32 2147483647, %v642
        %v899 = vand.u32 2147483647, %v643
        %v900 = vand.u32 2147483647, %v644
        %v901 = vand.u32 2147483647, %v645
        %v902 = vand.u32 2147483647, %v646
        %v903 = vand.u32 2147483647, %v647
        %v904 = vand.u32 2147483647, %v648
        %v905 = vand.u32 2147483647, %v649
        %v906 = vand.u32 2147483647, %v650
        %v907 = vand.u32 2147483647, %v651
        %v908 = vand.u32 2147483647, %v652
        %v909 = vand.u32 2147483647, %v653
        %v910 = vand.u32 2147483647, %v654
        %v911 = vand.u32 2147483647, %v655
        %v912 = vand.u32 2147483647, %v656
        %v913 = vand.u32 2147483647, %v657
        %v914 = vand.u32 2147483647, %v658
        %v915 = vsub.f32 0.0, %v787
        %v916 = vsub.f32 0.0, %v788
        %v917 = vsub.f32 0.0, %v789
        %v918 = vsub.f32 0.0, %v790
        %v919 = vsub.f32 0.0, %v791
        %v920 = vsub.f32 0.0, %v792
        %v921 = vsub.f32 0.0, %v793
        %v922 = vsub.f32 0.0, %v794
        %v923 = vsub.f32 0.0, %v795
        %v924 = vsub.f32 0.0, %v796
        %v925 = vsub.f32 0.0, %v797
        %v926 = vsub.f32 0.0, %v798
        %v927 = vsub.f32 0.0, %v799
        %v928 = vsub.f32 0.0, %v800
        %v929 = vsub.f32 0.0, %v801
        %v930 = vsub.f32 0.0, %v802
        %v931 = vsub.f32 0.0, %v803
        %v932 = vsub.f32 0.0, %v804
        %v933 = vsub.f32 0.0, %v805
        %v934 = vsub.f32 0.0, %v806
        %v935 = vsub.f32 0.0, %v807
        %v936 = vsub.f32 0.0, %v808
        %v937 = vsub.f32 0.0, %v809
        %v938 = vsub.f32 0.0, %v810
        %v939 = vsub.f32 0.0, %v811
        %v940 = vsub.f32 0.0, %v812
        %v941 = vsub.f32 0.0, %v813
        %v942 = vsub.f32 0.0, %v814
        %v943 = vsub.f32 0.0, %v815
        %v944 = vsub.f32 0.0, %v816
        %v945 = vsub.f32 0.0, %v817
        %v946 = vsub.f32 0.0, %v818
        %v947 = vsub.f32 0.0, %v819
        %v948 = vsub.f32 0.0, %v820
        %v949 = vsub.f32 0.0, %v821
        %v950 = vsub.f32 0.0, %v822
        %v951 = vsub.f32 0.0, %v823
        %v952 = vsub.f32 0.0, %v824
        %v953 = vsub.f32 0.0, %v825
        %v954 = vsub.f32 0.0, %v826
        %v955 = vsub.f32 0.0, %v827
        %v956 = vsub.f32 0.0, %v828
        %v957 = vsub.f32 0.0, %v829
        %v958 = vsub.f32 0.0, %v830
        %v959 = vsub.f32 0.0, %v831
        %v960 = vsub.f32 0.0, %v832
        %v961 = vsub.f32 0.0, %v833
        %v962 = vsub.f32 0.0, %v834
        %v963 = vsub.f32 0.0, %v835
        %v964 = vsub.f32 0.0, %v836
        %v965 = vsub.f32 0.0, %v837
        %v966 = vsub.f32 0.0, %v838
        %v967 = vsub.f32 0.0, %v839
        %v968 = vsub.f32 0.0, %v840
        %v969 = vsub.f32 0.0, %v841
        %v970 = vsub.f32 0.0, %v842
        %v971 = vsub.f32 0.0, %v843
        %v972 = vsub.f32 0.0, %v844
        %v973 = vsub.f32 0.0, %v845
        %v974 = vsub.f32 0.0, %v846
        %v975 = vsub.f32 0.0, %v847
        %v976 = vsub.f32 0.0, %v848
        %v977 = vsub.f32 0.0, %v849
        %v978 = vsub.f32 0.0, %v850
        %v979 = vsub.f32 0.0, %v851
        %v980 = vsub.f32 0.0, %v852
        %v981 = vsub.f32 0.0, %v853
        %v982 = vsub.f32 0.0, %v854
        %v983 = vsub.f32 0.0, %v855
        %v984 = vsub.f32 0.0, %v856
        %v985 = vsub.f32 0.0, %v857
        %v986 = vsub.f32 0.0, %v858
        %v987 = vsub.f32 0.0, %v859
        %v988 = vsub.f32 0.0, %v860
        %v989 = vsub.f32 0.0, %v861
        %v990 = vsub.f32 0.0, %v862
        %v991 = vsub.f32 0.0, %v863
        %v992 = vsub.f32 0.0, %v864
        %v993 = vsub.f32 0.0, %v865
        %v994 = vsub.f32 0.0, %v866
        %v995 = vsub.f32 0.0, %v867
        %v996 = vsub.f32 0.0, %v868
        %v997 = vsub.f32 0.0, %v869
        %v998 = vsub.f32 0.0, %v870
        %v999 = vsub.f32 0.0, %v871
        %v1000 = vsub.f32 0.0, %v872
        %v1001 = vsub.f32 0.0, %v873
        %v1002 = vsub.f32 0.0, %v874
        %v1003 = vsub.f32 0.0, %v875
        %v1004 = vsub.f32 0.0, %v876
        %v1005 = vsub.f32 0.0, %v877
        %v1006 = vsub.f32 0.0, %v878
        %v1007 = vsub.f32 0.0, %v879
        %v1008 = vsub.f32 0.0, %v880
        %v1009 = vsub.f32 0.0, %v881
        %v1010 = vsub.f32 0.0, %v882
        %v1011 = vsub.f32 0.0, %v883
        %v1012 = vsub.f32 0.0, %v884
        %v1013 = vsub.f32 0.0, %v885
        %v1014 = vsub.f32 0.0, %v886
        %v1015 = vsub.f32 0.0, %v887
        %v1016 = vsub.f32 0.0, %v888
        %v1017 = vsub.f32 0.0, %v889
        %v1018 = vsub.f32 0.0, %v890
        %v1019 = vsub.f32 0.0, %v891
        %v1020 = vsub.f32 0.0, %v892
        %v1021 = vsub.f32 0.0, %v893
        %v1022 = vsub.f32 0.0, %v894
        %v1023 = vsub.f32 0.0, %v895
        %v1024 = vsub.f32 0.0, %v896
        %v1025 = vsub.f32 0.0, %v897
        %v1026 = vsub.f32 0.0, %v898
        %v1027 = vsub.f32 0.0, %v899
        %v1028 = vsub.f32 0.0, %v900
        %v1029 = vsub.f32 0.0, %v901
        %v1030 = vsub.f32 0.0, %v902
        %v1031 = vsub.f32 0.0, %v903
        %v1032 = vsub.f32 0.0, %v904
        %v1033 = vsub.f32 0.0, %v905
        %v1034 = vsub.f32 0.0, %v906
        %v1035 = vsub.f32 0.0, %v907
        %v1036 = vsub.f32 0.0, %v908
        %v1037 = vsub.f32 0.0, %v909
        %v1038 = vsub.f32 0.0, %v910
        %v1039 = vsub.f32 0.0, %v911
        %v1040 = vsub.f32 0.0, %v912
        %v1041 = vsub.f32 0.0, %v913
        %v1042 = vsub.f32 0.0, %v914
        %v1043 = vmul.f32 %v915, 1.442695
        %v1044 = vpow.pop %v1043
        %v1045 = vmul.f32 %v916, 1.442695
        %v1046 = vpow.pop %v1045
        %v1047 = vmul.f32 %v917, 1.442695
        %v1048 = vpow.pop %v1047
        %v1049 = vmul.f32 %v918, 1.442695
        %v1050 = vpow.pop %v1049
        %v1051 = vmul.f32 %v919, 1.442695
        %v1052 = vpow.pop %v1051
        %v1053 = vmul.f32 %v920, 1.442695
        %v1054 = vpow.pop %v1053
        %v1055 = vmul.f32 %v921, 1.442695
        %v1056 = vpow.pop %v1055
        %v1057 = vmul.f32 %v922, 1.442695
        %v1058 = vpow.pop %v1057
        %v1059 = vmul.f32 %v923, 1.442695
        %v1060 = vpow.pop %v1059
        %v1061 = vmul.f32 %v924, 1.442695
        %v1062 = vpow.pop %v1061
        %v1063 = vmul.f32 %v925, 1.442695
        %v1064 = vpow.pop %v1063
        %v1065 = vmul.f32 %v926, 1.442695
        %v1066 = vpow.pop %v1065
        %v1067 = vmul.f32 %v927, 1.442695
        %v1068 = vpow.pop %v1067
        %v1069 = vmul.f32 %v928, 1.442695
        %v1070 = vpow.pop %v1069
        %v1071 = vmul.f32 %v929, 1.442695
        %v1072 = vpow.pop %v1071
        %v1073 = vmul.f32 %v930, 1.442695
        %v1074 = vpow.pop %v1073
        %v1075 = vmul.f32 %v931, 1.442695
        %v1076 = vpow.pop %v1075
        %v1077 = vmul.f32 %v932, 1.442695
        %v1078 = vpow.pop %v1077
        %v1079 = vmul.f32 %v933, 1.442695
        %v1080 = vpow.pop %v1079
        %v1081 = vmul.f32 %v934, 1.442695
        %v1082 = vpow.pop %v1081
        %v1083 = vmul.f32 %v935, 1.442695
        %v1084 = vpow.pop %v1083
        %v1085 = vmul.f32 %v936, 1.442695
        %v1086 = vpow.pop %v1085
        %v1087 = vmul.f32 %v937, 1.442695
        %v1088 = vpow.pop %v1087
        %v1089 = vmul.f32 %v938, 1.442695
        %v1090 = vpow.pop %v1089
        %v1091 = vmul.f32 %v939, 1.442695
        %v1092 = vpow.pop %v1091
        %v1093 = vmul.f32 %v940, 1.442695
        %v1094 = vpow.pop %v1093
        %v1095 = vmul.f32 %v941, 1.442695
        %v1096 = vpow.pop %v1095
        %v1097 = vmul.f32 %v942, 1.442695
        %v1098 = vpow.pop %v1097
        %v1099 = vmul.f32 %v943, 1.442695
        %v1100 = vpow.pop %v1099
        %v1101 = vmul.f32 %v944, 1.442695
        %v1102 = vpow.pop %v1101
        %v1103 = vmul.f32 %v945, 1.442695
        %v1104 = vpow.pop %v1103
        %v1105 = vmul.f32 %v946, 1.442695
        %v1106 = vpow.pop %v1105
        %v1107 = vmul.f32 %v947, 1.442695
        %v1108 = vpow.pop %v1107
        %v1109 = vmul.f32 %v948, 1.442695
        %v1110 = vpow.pop %v1109
        %v1111 = vmul.f32 %v949, 1.442695
        %v1112 = vpow.pop %v1111
        %v1113 = vmul.f32 %v950, 1.442695
        %v1114 = vpow.pop %v1113
        %v1115 = vmul.f32 %v951, 1.442695
        %v1116 = vpow.pop %v1115
        %v1117 = vmul.f32 %v952, 1.442695
        %v1118 = vpow.pop %v1117
        %v1119 = vmul.f32 %v953, 1.442695
        %v1120 = vpow.pop %v1119
        %v1121 = vmul.f32 %v954, 1.442695
        %v1122 = vpow.pop %v1121
        %v1123 = vmul.f32 %v955, 1.442695
        %v1124 = vpow.pop %v1123
        %v1125 = vmul.f32 %v956, 1.442695
        %v1126 = vpow.pop %v1125
        %v1127 = vmul.f32 %v957, 1.442695
        %v1128 = vpow.pop %v1127
        %v1129 = vmul.f32 %v958, 1.442695
        %v1130 = vpow.pop %v1129
        %v1131 = vmul.f32 %v959, 1.442695
        %v1132 = vpow.pop %v1131
        %v1133 = vmul.f32 %v960, 1.442695
        %v1134 = vpow.pop %v1133
        %v1135 = vmul.f32 %v961, 1.442695
        %v1136 = vpow.pop %v1135
        %v1137 = vmul.f32 %v962, 1.442695
        %v1138 = vpow.pop %v1137
        %v1139 = vmul.f32 %v963, 1.442695
        %v1140 = vpow.pop %v1139
        %v1141 = vmul.f32 %v964, 1.442695
        %v1142 = vpow.pop %v1141
        %v1143 = vmul.f32 %v965, 1.442695
        %v1144 = vpow.pop %v1143
        %v1145 = vmul.f32 %v966, 1.442695
        %v1146 = vpow.pop %v1145
        %v1147 = vmul.f32 %v967, 1.442695
        %v1148 = vpow.pop %v1147
        %v1149 = vmul.f32 %v968, 1.442695
        %v1150 = vpow.pop %v1149
        %v1151 = vmul.f32 %v969, 1.442695
        %v1152 = vpow.pop %v1151
        %v1153 = vmul.f32 %v970, 1.442695
        %v1154 = vpow.pop %v1153
        %v1155 = vmul.f32 %v971, 1.442695
        %v1156 = vpow.pop %v1155
        %v1157 = vmul.f32 %v972, 1.442695
        %v1158 = vpow.pop %v1157
        %v1159 = vmul.f32 %v973, 1.442695
        %v1160 = vpow.pop %v1159
        %v1161 = vmul.f32 %v974, 1.442695
        %v1162 = vpow.pop %v1161
        %v1163 = vmul.f32 %v975, 1.442695
        %v1164 = vpow.pop %v1163
        %v1165 = vmul.f32 %v976, 1.442695
        %v1166 = vpow.pop %v1165
        %v1167 = vmul.f32 %v977, 1.442695
        %v1168 = vpow.pop %v1167
        %v1169 = vmul.f32 %v978, 1.442695
        %v1170 = vpow.pop %v1169
        %v1171 = vmul.f32 %v979, 1.442695
        %v1172 = vpow.pop %v1171
        %v1173 = vmul.f32 %v980, 1.442695
        %v1174 = vpow.pop %v1173
        %v1175 = vmul.f32 %v981, 1.442695
        %v1176 = vpow.pop %v1175
        %v1177 = vmul.f32 %v982, 1.442695
        %v1178 = vpow.pop %v1177
        %v1179 = vmul.f32 %v983, 1.442695
        %v1180 = vpow.pop %v1179
        %v1181 = vmul.f32 %v984, 1.442695
        %v1182 = vpow.pop %v1181
        %v1183 = vmul.f32 %v985, 1.442695
        %v1184 = vpow.pop %v1183
        %v1185 = vmul.f32 %v986, 1.442695
        %v1186 = vpow.pop %v1185
        %v1187 = vmul.f32 %v987, 1.442695
        %v1188 = vpow.pop %v1187
        %v1189 = vmul.f32 %v988, 1.442695
        %v1190 = vpow.pop %v1189
        %v1191 = vmul.f32 %v989, 1.442695
        %v1192 = vpow.pop %v1191
        %v1193 = vmul.f32 %v990, 1.442695
        %v1194 = vpow.pop %v1193
        %v1195 = vmul.f32 %v991, 1.442695
        %v1196 = vpow.pop %v1195
        %v1197 = vmul.f32 %v992, 1.442695
        %v1198 = vpow.pop %v1197
        %v1199 = vmul.f32 %v993, 1.442695
        %v1200 = vpow.pop %v1199
        %v1201 = vmul.f32 %v994, 1.442695
        %v1202 = vpow.pop %v1201
        %v1203 = vmul.f32 %v995, 1.442695
        %v1204 = vpow.pop %v1203
        %v1205 = vmul.f32 %v996, 1.442695
        %v1206 = vpow.pop %v1205
        %v1207 = vmul.f32 %v997, 1.442695
        %v1208 = vpow.pop %v1207
        %v1209 = vmul.f32 %v998, 1.442695
        %v1210 = vpow.pop %v1209
        %v1211 = vmul.f32 %v999, 1.442695
        %v1212 = vpow.pop %v1211
        %v1213 = vmul.f32 %v1000, 1.442695
        %v1214 = vpow.pop %v1213
        %v1215 = vmul.f32 %v1001, 1.442695
        %v1216 = vpow.pop %v1215
        %v1217 = vmul.f32 %v1002, 1.442695
        %v1218 = vpow.pop %v1217
        %v1219 = vmul.f32 %v1003, 1.442695
        %v1220 = vpow.pop %v1219
        %v1221 = vmul.f32 %v1004, 1.442695
        %v1222 = vpow.pop %v1221
        %v1223 = vmul.f32 %v1005, 1.442695
        %v1224 = vpow.pop %v1223
        %v1225 = vmul.f32 %v1006, 1.442695
        %v1226 = vpow.pop %v1225
        %v1227 = vmul.f32 %v1007, 1.442695
        %v1228 = vpow.pop %v1227
        %v1229 = vmul.f32 %v1008, 1.442695
        %v1230 = vpow.pop %v1229
        %v1231 = vmul.f32 %v1009, 1.442695
        %v1232 = vpow.pop %v1231
        %v1233 = vmul.f32 %v1010, 1.442695
        %v1234 = vpow.pop %v1233
        %v1235 = vmul.f32 %v1011, 1.442695
        %v1236 = vpow.pop %v1235
        %v1237 = vmul.f32 %v1012, 1.442695
        %v1238 = vpow.pop %v1237
        %v1239 = vmul.f32 %v1013, 1.442695
        %v1240 = vpow.pop %v1239
        %v1241 = vmul.f32 %v1014, 1.442695
        %v1242 = vpow.pop %v1241
        %v1243 = vmul.f32 %v1015, 1.442695
        %v1244 = vpow.pop %v1243
        %v1245 = vmul.f32 %v1016, 1.442695
        %v1246 = vpow.pop %v1245
        %v1247 = vmul.f32 %v1017, 1.442695
        %v1248 = vpow.pop %v1247
        %v1249 = vmul.f32 %v1018, 1.442695
        %v1250 = vpow.pop %v1249
        %v1251 = vmul.f32 %v1019, 1.442695
        %v1252 = vpow.pop %v1251
        %v1253 = vmul.f32 %v1020, 1.442695
        %v1254 = vpow.pop %v1253
        %v1255 = vmul.f32 %v1021, 1.442695
        %v1256 = vpow.pop %v1255
        %v1257 = vmul.f32 %v1022, 1.442695
        %v1258 = vpow.pop %v1257
        %v1259 = vmul.f32 %v1023, 1.442695
        %v1260 = vpow.pop %v1259
        %v1261 = vmul.f32 %v1024, 1.442695
        %v1262 = vpow.pop %v1261
        %v1263 = vmul.f32 %v1025, 1.442695
        %v1264 = vpow.pop %v1263
        %v1265 = vmul.f32 %v1026, 1.442695
        %v1266 = vpow.pop %v1265
        %v1267 = vmul.f32 %v1027, 1.442695
        %v1268 = vpow.pop %v1267
        %v1269 = vmul.f32 %v1028, 1.442695
        %v1270 = vpow.pop %v1269
        %v1271 = vmul.f32 %v1029, 1.442695
        %v1272 = vpow.pop %v1271
        %v1273 = vmul.f32 %v1030, 1.442695
        %v1274 = vpow.pop %v1273
        %v1275 = vmul.f32 %v1031, 1.442695
        %v1276 = vpow.pop %v1275
        %v1277 = vmul.f32 %v1032, 1.442695
        %v1278 = vpow.pop %v1277
        %v1279 = vmul.f32 %v1033, 1.442695
        %v1280 = vpow.pop %v1279
        %v1281 = vmul.f32 %v1034, 1.442695
        %v1282 = vpow.pop %v1281
        %v1283 = vmul.f32 %v1035, 1.442695
        %v1284 = vpow.pop %v1283
        %v1285 = vmul.f32 %v1036, 1.442695
        %v1286 = vpow.pop %v1285
        %v1287 = vmul.f32 %v1037, 1.442695
        %v1288 = vpow.pop %v1287
        %v1289 = vmul.f32 %v1038, 1.442695
        %v1290 = vpow.pop %v1289
        %v1291 = vmul.f32 %v1039, 1.442695
        %v1292 = vpow.pop %v1291
        %v1293 = vmul.f32 %v1040, 1.442695
        %v1294 = vpow.pop %v1293
        %v1295 = vmul.f32 %v1041, 1.442695
        %v1296 = vpow.pop %v1295
        %v1297 = vmul.f32 %v1042, 1.442695
        %v1298 = vpow.pop %v1297
        %v1299 = vadd.f32 %v1044, 1.0
        %v1300 = vlog2.pop %v1299
        %v1301 = vmul.f32 %v1300, 0.6931472
        %v1302 = vmul.f32 -0.5, %v1044
        %v1303 = vadd.f32 %v1302, 1.0
        %v1304 = vmul.f32 %v1303, %v1044
        %v1305 = vand.u32 2147483647, %v1044
        %vm1306 = vcmp.lt.f32.partialorder %v1305, 0.0004427343
        %v1307 = vsel %vm1306, %v1304, %v1301
        %v1308 = vadd.f32 %v1046, 1.0
        %v1309 = vlog2.pop %v1308
        %v1310 = vmul.f32 %v1309, 0.6931472
        %v1311 = vmul.f32 -0.5, %v1046
        %v1312 = vadd.f32 %v1311, 1.0
        %v1313 = vmul.f32 %v1312, %v1046
        %v1314 = vand.u32 2147483647, %v1046
        %vm1315 = vcmp.lt.f32.partialorder %v1314, 0.0004427343
        %v1316 = vsel %vm1315, %v1313, %v1310
        %v1317 = vadd.f32 %v1048, 1.0
        %v1318 = vlog2.pop %v1317
        %v1319 = vmul.f32 %v1318, 0.6931472
        %v1320 = vmul.f32 -0.5, %v1048
        %v1321 = vadd.f32 %v1320, 1.0
        %v1322 = vmul.f32 %v1321, %v1048
        %v1323 = vand.u32 2147483647, %v1048
        %vm1324 = vcmp.lt.f32.partialorder %v1323, 0.0004427343
        %v1325 = vsel %vm1324, %v1322, %v1319
        %v1326 = vadd.f32 %v1050, 1.0
        %v1327 = vlog2.pop %v1326
        %v1328 = vmul.f32 %v1327, 0.6931472
        %v1329 = vmul.f32 -0.5, %v1050
        %v1330 = vadd.f32 %v1329, 1.0
        %v1331 = vmul.f32 %v1330, %v1050
        %v1332 = vand.u32 2147483647, %v1050
        %vm1333 = vcmp.lt.f32.partialorder %v1332, 0.0004427343
        %v1334 = vsel %vm1333, %v1331, %v1328
        %v1335 = vadd.f32 %v1052, 1.0
        %v1336 = vlog2.pop %v1335
        %v1337 = vmul.f32 %v1336, 0.6931472
        %v1338 = vmul.f32 -0.5, %v1052
        %v1339 = vadd.f32 %v1338, 1.0
        %v1340 = vmul.f32 %v1339, %v1052
        %v1341 = vand.u32 2147483647, %v1052
        %vm1342 = vcmp.lt.f32.partialorder %v1341, 0.0004427343
        %v1343 = vsel %vm1342, %v1340, %v1337
        %v1344 = vadd.f32 %v1054, 1.0
        %v1345 = vlog2.pop %v1344
        %v1346 = vmul.f32 %v1345, 0.6931472
        %v1347 = vmul.f32 -0.5, %v1054
        %v1348 = vadd.f32 %v1347, 1.0
        %v1349 = vmul.f32 %v1348, %v1054
        %v1350 = vand.u32 2147483647, %v1054
        %vm1351 = vcmp.lt.f32.partialorder %v1350, 0.0004427343
        %v1352 = vsel %vm1351, %v1349, %v1346
        %v1353 = vadd.f32 %v1056, 1.0
        %v1354 = vlog2.pop %v1353
        %v1355 = vmul.f32 %v1354, 0.6931472
        %v1356 = vmul.f32 -0.5, %v1056
        %v1357 = vadd.f32 %v1356, 1.0
        %v1358 = vmul.f32 %v1357, %v1056
        %v1359 = vand.u32 2147483647, %v1056
        %vm1360 = vcmp.lt.f32.partialorder %v1359, 0.0004427343
        %v1361 = vsel %vm1360, %v1358, %v1355
        %v1362 = vadd.f32 %v1058, 1.0
        %v1363 = vlog2.pop %v1362
        %v1364 = vmul.f32 %v1363, 0.6931472
        %v1365 = vmul.f32 -0.5, %v1058
        %v1366 = vadd.f32 %v1365, 1.0
        %v1367 = vmul.f32 %v1366, %v1058
        %v1368 = vand.u32 2147483647, %v1058
        %vm1369 = vcmp.lt.f32.partialorder %v1368, 0.0004427343
        %v1370 = vsel %vm1369, %v1367, %v1364
        %v1371 = vadd.f32 %v1060, 1.0
        %v1372 = vlog2.pop %v1371
        %v1373 = vmul.f32 %v1372, 0.6931472
        %v1374 = vmul.f32 -0.5, %v1060
        %v1375 = vadd.f32 %v1374, 1.0
        %v1376 = vmul.f32 %v1375, %v1060
        %v1377 = vand.u32 2147483647, %v1060
        %vm1378 = vcmp.lt.f32.partialorder %v1377, 0.0004427343
        %v1379 = vsel %vm1378, %v1376, %v1373
        %v1380 = vadd.f32 %v1062, 1.0
        %v1381 = vlog2.pop %v1380
        %v1382 = vmul.f32 %v1381, 0.6931472
        %v1383 = vmul.f32 -0.5, %v1062
        %v1384 = vadd.f32 %v1383, 1.0
        %v1385 = vmul.f32 %v1384, %v1062
        %v1386 = vand.u32 2147483647, %v1062
        %vm1387 = vcmp.lt.f32.partialorder %v1386, 0.0004427343
        %v1388 = vsel %vm1387, %v1385, %v1382
        %v1389 = vadd.f32 %v1064, 1.0
        %v1390 = vlog2.pop %v1389
        %v1391 = vmul.f32 %v1390, 0.6931472
        %v1392 = vmul.f32 -0.5, %v1064
        %v1393 = vadd.f32 %v1392, 1.0
        %v1394 = vmul.f32 %v1393, %v1064
        %v1395 = vand.u32 2147483647, %v1064
        %vm1396 = vcmp.lt.f32.partialorder %v1395, 0.0004427343
        %v1397 = vsel %vm1396, %v1394, %v1391
        %v1398 = vadd.f32 %v1066, 1.0
        %v1399 = vlog2.pop %v1398
        %v1400 = vmul.f32 %v1399, 0.6931472
        %v1401 = vmul.f32 -0.5, %v1066
        %v1402 = vadd.f32 %v1401, 1.0
        %v1403 = vmul.f32 %v1402, %v1066
        %v1404 = vand.u32 2147483647, %v1066
        %vm1405 = vcmp.lt.f32.partialorder %v1404, 0.0004427343
        %v1406 = vsel %vm1405, %v1403, %v1400
        %v1407 = vadd.f32 %v1068, 1.0
        %v1408 = vlog2.pop %v1407
        %v1409 = vmul.f32 %v1408, 0.6931472
        %v1410 = vmul.f32 -0.5, %v1068
        %v1411 = vadd.f32 %v1410, 1.0
        %v1412 = vmul.f32 %v1411, %v1068
        %v1413 = vand.u32 2147483647, %v1068
        %vm1414 = vcmp.lt.f32.partialorder %v1413, 0.0004427343
        %v1415 = vsel %vm1414, %v1412, %v1409
        %v1416 = vadd.f32 %v1070, 1.0
        %v1417 = vlog2.pop %v1416
        %v1418 = vmul.f32 %v1417, 0.6931472
        %v1419 = vmul.f32 -0.5, %v1070
        %v1420 = vadd.f32 %v1419, 1.0
        %v1421 = vmul.f32 %v1420, %v1070
        %v1422 = vand.u32 2147483647, %v1070
        %vm1423 = vcmp.lt.f32.partialorder %v1422, 0.0004427343
        %v1424 = vsel %vm1423, %v1421, %v1418
        %v1425 = vadd.f32 %v1072, 1.0
        %v1426 = vlog2.pop %v1425
        %v1427 = vmul.f32 %v1426, 0.6931472
        %v1428 = vmul.f32 -0.5, %v1072
        %v1429 = vadd.f32 %v1428, 1.0
        %v1430 = vmul.f32 %v1429, %v1072
        %v1431 = vand.u32 2147483647, %v1072
        %vm1432 = vcmp.lt.f32.partialorder %v1431, 0.0004427343
        %v1433 = vsel %vm1432, %v1430, %v1427
        %v1434 = vadd.f32 %v1074, 1.0
        %v1435 = vlog2.pop %v1434
        %v1436 = vmul.f32 %v1435, 0.6931472
        %v1437 = vmul.f32 -0.5, %v1074
        %v1438 = vadd.f32 %v1437, 1.0
        %v1439 = vmul.f32 %v1438, %v1074
        %v1440 = vand.u32 2147483647, %v1074
        %vm1441 = vcmp.lt.f32.partialorder %v1440, 0.0004427343
        %v1442 = vsel %vm1441, %v1439, %v1436
        %v1443 = vadd.f32 %v1076, 1.0
        %v1444 = vlog2.pop %v1443
        %v1445 = vmul.f32 %v1444, 0.6931472
        %v1446 = vmul.f32 -0.5, %v1076
        %v1447 = vadd.f32 %v1446, 1.0
        %v1448 = vmul.f32 %v1447, %v1076
        %v1449 = vand.u32 2147483647, %v1076
        %vm1450 = vcmp.lt.f32.partialorder %v1449, 0.0004427343
        %v1451 = vsel %vm1450, %v1448, %v1445
        %v1452 = vadd.f32 %v1078, 1.0
        %v1453 = vlog2.pop %v1452
        %v1454 = vmul.f32 %v1453, 0.6931472
        %v1455 = vmul.f32 -0.5, %v1078
        %v1456 = vadd.f32 %v1455, 1.0
        %v1457 = vmul.f32 %v1456, %v1078
        %v1458 = vand.u32 2147483647, %v1078
        %vm1459 = vcmp.lt.f32.partialorder %v1458, 0.0004427343
        %v1460 = vsel %vm1459, %v1457, %v1454
        %v1461 = vadd.f32 %v1080, 1.0
        %v1462 = vlog2.pop %v1461
        %v1463 = vmul.f32 %v1462, 0.6931472
        %v1464 = vmul.f32 -0.5, %v1080
        %v1465 = vadd.f32 %v1464, 1.0
        %v1466 = vmul.f32 %v1465, %v1080
        %v1467 = vand.u32 2147483647, %v1080
        %vm1468 = vcmp.lt.f32.partialorder %v1467, 0.0004427343
        %v1469 = vsel %vm1468, %v1466, %v1463
        %v1470 = vadd.f32 %v1082, 1.0
        %v1471 = vlog2.pop %v1470
        %v1472 = vmul.f32 %v1471, 0.6931472
        %v1473 = vmul.f32 -0.5, %v1082
        %v1474 = vadd.f32 %v1473, 1.0
        %v1475 = vmul.f32 %v1474, %v1082
        %v1476 = vand.u32 2147483647, %v1082
        %vm1477 = vcmp.lt.f32.partialorder %v1476, 0.0004427343
        %v1478 = vsel %vm1477, %v1475, %v1472
        %v1479 = vadd.f32 %v1084, 1.0
        %v1480 = vlog2.pop %v1479
        %v1481 = vmul.f32 %v1480, 0.6931472
        %v1482 = vmul.f32 -0.5, %v1084
        %v1483 = vadd.f32 %v1482, 1.0
        %v1484 = vmul.f32 %v1483, %v1084
        %v1485 = vand.u32 2147483647, %v1084
        %vm1486 = vcmp.lt.f32.partialorder %v1485, 0.0004427343
        %v1487 = vsel %vm1486, %v1484, %v1481
        %v1488 = vadd.f32 %v1086, 1.0
        %v1489 = vlog2.pop %v1488
        %v1490 = vmul.f32 %v1489, 0.6931472
        %v1491 = vmul.f32 -0.5, %v1086
        %v1492 = vadd.f32 %v1491, 1.0
        %v1493 = vmul.f32 %v1492, %v1086
        %v1494 = vand.u32 2147483647, %v1086
        %vm1495 = vcmp.lt.f32.partialorder %v1494, 0.0004427343
        %v1496 = vsel %vm1495, %v1493, %v1490
        %v1497 = vadd.f32 %v1088, 1.0
        %v1498 = vlog2.pop %v1497
        %v1499 = vmul.f32 %v1498, 0.6931472
        %v1500 = vmul.f32 -0.5, %v1088
        %v1501 = vadd.f32 %v1500, 1.0
        %v1502 = vmul.f32 %v1501, %v1088
        %v1503 = vand.u32 2147483647, %v1088
        %vm1504 = vcmp.lt.f32.partialorder %v1503, 0.0004427343
        %v1505 = vsel %vm1504, %v1502, %v1499
        %v1506 = vadd.f32 %v1090, 1.0
        %v1507 = vlog2.pop %v1506
        %v1508 = vmul.f32 %v1507, 0.6931472
        %v1509 = vmul.f32 -0.5, %v1090
        %v1510 = vadd.f32 %v1509, 1.0
        %v1511 = vmul.f32 %v1510, %v1090
        %v1512 = vand.u32 2147483647, %v1090
        %vm1513 = vcmp.lt.f32.partialorder %v1512, 0.0004427343
        %v1514 = vsel %vm1513, %v1511, %v1508
        %v1515 = vadd.f32 %v1092, 1.0
        %v1516 = vlog2.pop %v1515
        %v1517 = vmul.f32 %v1516, 0.6931472
        %v1518 = vmul.f32 -0.5, %v1092
        %v1519 = vadd.f32 %v1518, 1.0
        %v1520 = vmul.f32 %v1519, %v1092
        %v1521 = vand.u32 2147483647, %v1092
        %vm1522 = vcmp.lt.f32.partialorder %v1521, 0.0004427343
        %v1523 = vsel %vm1522, %v1520, %v1517
        %v1524 = vadd.f32 %v1094, 1.0
        %v1525 = vlog2.pop %v1524
        %v1526 = vmul.f32 %v1525, 0.6931472
        %v1527 = vmul.f32 -0.5, %v1094
        %v1528 = vadd.f32 %v1527, 1.0
        %v1529 = vmul.f32 %v1528, %v1094
        %v1530 = vand.u32 2147483647, %v1094
        %vm1531 = vcmp.lt.f32.partialorder %v1530, 0.0004427343
        %v1532 = vsel %vm1531, %v1529, %v1526
        %v1533 = vadd.f32 %v1096, 1.0
        %v1534 = vlog2.pop %v1533
        %v1535 = vmul.f32 %v1534, 0.6931472
        %v1536 = vmul.f32 -0.5, %v1096
        %v1537 = vadd.f32 %v1536, 1.0
        %v1538 = vmul.f32 %v1537, %v1096
        %v1539 = vand.u32 2147483647, %v1096
        %vm1540 = vcmp.lt.f32.partialorder %v1539, 0.0004427343
        %v1541 = vsel %vm1540, %v1538, %v1535
        %v1542 = vadd.f32 %v1098, 1.0
        %v1543 = vlog2.pop %v1542
        %v1544 = vmul.f32 %v1543, 0.6931472
        %v1545 = vmul.f32 -0.5, %v1098
        %v1546 = vadd.f32 %v1545, 1.0
        %v1547 = vmul.f32 %v1546, %v1098
        %v1548 = vand.u32 2147483647, %v1098
        %vm1549 = vcmp.lt.f32.partialorder %v1548, 0.0004427343
        %v1550 = vsel %vm1549, %v1547, %v1544
        %v1551 = vadd.f32 %v1100, 1.0
        %v1552 = vlog2.pop %v1551
        %v1553 = vmul.f32 %v1552, 0.6931472
        %v1554 = vmul.f32 -0.5, %v1100
        %v1555 = vadd.f32 %v1554, 1.0
        %v1556 = vmul.f32 %v1555, %v1100
        %v1557 = vand.u32 2147483647, %v1100
        %vm1558 = vcmp.lt.f32.partialorder %v1557, 0.0004427343
        %v1559 = vsel %vm1558, %v1556, %v1553
        %v1560 = vadd.f32 %v1102, 1.0
        %v1561 = vlog2.pop %v1560
        %v1562 = vmul.f32 %v1561, 0.6931472
        %v1563 = vmul.f32 -0.5, %v1102
        %v1564 = vadd.f32 %v1563, 1.0
        %v1565 = vmul.f32 %v1564, %v1102
        %v1566 = vand.u32 2147483647, %v1102
        %vm1567 = vcmp.lt.f32.partialorder %v1566, 0.0004427343
        %v1568 = vsel %vm1567, %v1565, %v1562
        %v1569 = vadd.f32 %v1104, 1.0
        %v1570 = vlog2.pop %v1569
        %v1571 = vmul.f32 %v1570, 0.6931472
        %v1572 = vmul.f32 -0.5, %v1104
        %v1573 = vadd.f32 %v1572, 1.0
        %v1574 = vmul.f32 %v1573, %v1104
        %v1575 = vand.u32 2147483647, %v1104
        %vm1576 = vcmp.lt.f32.partialorder %v1575, 0.0004427343
        %v1577 = vsel %vm1576, %v1574, %v1571
        %v1578 = vadd.f32 %v1106, 1.0
        %v1579 = vlog2.pop %v1578
        %v1580 = vmul.f32 %v1579, 0.6931472
        %v1581 = vmul.f32 -0.5, %v1106
        %v1582 = vadd.f32 %v1581, 1.0
        %v1583 = vmul.f32 %v1582, %v1106
        %v1584 = vand.u32 2147483647, %v1106
        %vm1585 = vcmp.lt.f32.partialorder %v1584, 0.0004427343
        %v1586 = vsel %vm1585, %v1583, %v1580
        %v1587 = vadd.f32 %v1108, 1.0
        %v1588 = vlog2.pop %v1587
        %v1589 = vmul.f32 %v1588, 0.6931472
        %v1590 = vmul.f32 -0.5, %v1108
        %v1591 = vadd.f32 %v1590, 1.0
        %v1592 = vmul.f32 %v1591, %v1108
        %v1593 = vand.u32 2147483647, %v1108
        %vm1594 = vcmp.lt.f32.partialorder %v1593, 0.0004427343
        %v1595 = vsel %vm1594, %v1592, %v1589
        %v1596 = vadd.f32 %v1110, 1.0
        %v1597 = vlog2.pop %v1596
        %v1598 = vmul.f32 %v1597, 0.6931472
        %v1599 = vmul.f32 -0.5, %v1110
        %v1600 = vadd.f32 %v1599, 1.0
        %v1601 = vmul.f32 %v1600, %v1110
        %v1602 = vand.u32 2147483647, %v1110
        %vm1603 = vcmp.lt.f32.partialorder %v1602, 0.0004427343
        %v1604 = vsel %vm1603, %v1601, %v1598
        %v1605 = vadd.f32 %v1112, 1.0
        %v1606 = vlog2.pop %v1605
        %v1607 = vmul.f32 %v1606, 0.6931472
        %v1608 = vmul.f32 -0.5, %v1112
        %v1609 = vadd.f32 %v1608, 1.0
        %v1610 = vmul.f32 %v1609, %v1112
        %v1611 = vand.u32 2147483647, %v1112
        %vm1612 = vcmp.lt.f32.partialorder %v1611, 0.0004427343
        %v1613 = vsel %vm1612, %v1610, %v1607
        %v1614 = vadd.f32 %v1114, 1.0
        %v1615 = vlog2.pop %v1614
        %v1616 = vmul.f32 %v1615, 0.6931472
        %v1617 = vmul.f32 -0.5, %v1114
        %v1618 = vadd.f32 %v1617, 1.0
        %v1619 = vmul.f32 %v1618, %v1114
        %v1620 = vand.u32 2147483647, %v1114
        %vm1621 = vcmp.lt.f32.partialorder %v1620, 0.0004427343
        %v1622 = vsel %vm1621, %v1619, %v1616
        %v1623 = vadd.f32 %v1116, 1.0
        %v1624 = vlog2.pop %v1623
        %v1625 = vmul.f32 %v1624, 0.6931472
        %v1626 = vmul.f32 -0.5, %v1116
        %v1627 = vadd.f32 %v1626, 1.0
        %v1628 = vmul.f32 %v1627, %v1116
        %v1629 = vand.u32 2147483647, %v1116
        %vm1630 = vcmp.lt.f32.partialorder %v1629, 0.0004427343
        %v1631 = vsel %vm1630, %v1628, %v1625
        %v1632 = vadd.f32 %v1118, 1.0
        %v1633 = vlog2.pop %v1632
        %v1634 = vmul.f32 %v1633, 0.6931472
        %v1635 = vmul.f32 -0.5, %v1118
        %v1636 = vadd.f32 %v1635, 1.0
        %v1637 = vmul.f32 %v1636, %v1118
        %v1638 = vand.u32 2147483647, %v1118
        %vm1639 = vcmp.lt.f32.partialorder %v1638, 0.0004427343
        %v1640 = vsel %vm1639, %v1637, %v1634
        %v1641 = vadd.f32 %v1120, 1.0
        %v1642 = vlog2.pop %v1641
        %v1643 = vmul.f32 %v1642, 0.6931472
        %v1644 = vmul.f32 -0.5, %v1120
        %v1645 = vadd.f32 %v1644, 1.0
        %v1646 = vmul.f32 %v1645, %v1120
        %v1647 = vand.u32 2147483647, %v1120
        %vm1648 = vcmp.lt.f32.partialorder %v1647, 0.0004427343
        %v1649 = vsel %vm1648, %v1646, %v1643
        %v1650 = vadd.f32 %v1122, 1.0
        %v1651 = vlog2.pop %v1650
        %v1652 = vmul.f32 %v1651, 0.6931472
        %v1653 = vmul.f32 -0.5, %v1122
        %v1654 = vadd.f32 %v1653, 1.0
        %v1655 = vmul.f32 %v1654, %v1122
        %v1656 = vand.u32 2147483647, %v1122
        %vm1657 = vcmp.lt.f32.partialorder %v1656, 0.0004427343
        %v1658 = vsel %vm1657, %v1655, %v1652
        %v1659 = vadd.f32 %v1124, 1.0
        %v1660 = vlog2.pop %v1659
        %v1661 = vmul.f32 %v1660, 0.6931472
        %v1662 = vmul.f32 -0.5, %v1124
        %v1663 = vadd.f32 %v1662, 1.0
        %v1664 = vmul.f32 %v1663, %v1124
        %v1665 = vand.u32 2147483647, %v1124
        %vm1666 = vcmp.lt.f32.partialorder %v1665, 0.0004427343
        %v1667 = vsel %vm1666, %v1664, %v1661
        %v1668 = vadd.f32 %v1126, 1.0
        %v1669 = vlog2.pop %v1668
        %v1670 = vmul.f32 %v1669, 0.6931472
        %v1671 = vmul.f32 -0.5, %v1126
        %v1672 = vadd.f32 %v1671, 1.0
        %v1673 = vmul.f32 %v1672, %v1126
        %v1674 = vand.u32 2147483647, %v1126
        %vm1675 = vcmp.lt.f32.partialorder %v1674, 0.0004427343
        %v1676 = vsel %vm1675, %v1673, %v1670
        %v1677 = vadd.f32 %v1128, 1.0
        %v1678 = vlog2.pop %v1677
        %v1679 = vmul.f32 %v1678, 0.6931472
        %v1680 = vmul.f32 -0.5, %v1128
        %v1681 = vadd.f32 %v1680, 1.0
        %v1682 = vmul.f32 %v1681, %v1128
        %v1683 = vand.u32 2147483647, %v1128
        %vm1684 = vcmp.lt.f32.partialorder %v1683, 0.0004427343
        %v1685 = vsel %vm1684, %v1682, %v1679
        %v1686 = vadd.f32 %v1130, 1.0
        %v1687 = vlog2.pop %v1686
        %v1688 = vmul.f32 %v1687, 0.6931472
        %v1689 = vmul.f32 -0.5, %v1130
        %v1690 = vadd.f32 %v1689, 1.0
        %v1691 = vmul.f32 %v1690, %v1130
        %v1692 = vand.u32 2147483647, %v1130
        %vm1693 = vcmp.lt.f32.partialorder %v1692, 0.0004427343
        %v1694 = vsel %vm1693, %v1691, %v1688
        %v1695 = vadd.f32 %v1132, 1.0
        %v1696 = vlog2.pop %v1695
        %v1697 = vmul.f32 %v1696, 0.6931472
        %v1698 = vmul.f32 -0.5, %v1132
        %v1699 = vadd.f32 %v1698, 1.0
        %v1700 = vmul.f32 %v1699, %v1132
        %v1701 = vand.u32 2147483647, %v1132
        %vm1702 = vcmp.lt.f32.partialorder %v1701, 0.0004427343
        %v1703 = vsel %vm1702, %v1700, %v1697
        %v1704 = vadd.f32 %v1134, 1.0
        %v1705 = vlog2.pop %v1704
        %v1706 = vmul.f32 %v1705, 0.6931472
        %v1707 = vmul.f32 -0.5, %v1134
        %v1708 = vadd.f32 %v1707, 1.0
        %v1709 = vmul.f32 %v1708, %v1134
        %v1710 = vand.u32 2147483647, %v1134
        %vm1711 = vcmp.lt.f32.partialorder %v1710, 0.0004427343
        %v1712 = vsel %vm1711, %v1709, %v1706
        %v1713 = vadd.f32 %v1136, 1.0
        %v1714 = vlog2.pop %v1713
        %v1715 = vmul.f32 %v1714, 0.6931472
        %v1716 = vmul.f32 -0.5, %v1136
        %v1717 = vadd.f32 %v1716, 1.0
        %v1718 = vmul.f32 %v1717, %v1136
        %v1719 = vand.u32 2147483647, %v1136
        %vm1720 = vcmp.lt.f32.partialorder %v1719, 0.0004427343
        %v1721 = vsel %vm1720, %v1718, %v1715
        %v1722 = vadd.f32 %v1138, 1.0
        %v1723 = vlog2.pop %v1722
        %v1724 = vmul.f32 %v1723, 0.6931472
        %v1725 = vmul.f32 -0.5, %v1138
        %v1726 = vadd.f32 %v1725, 1.0
        %v1727 = vmul.f32 %v1726, %v1138
        %v1728 = vand.u32 2147483647, %v1138
        %vm1729 = vcmp.lt.f32.partialorder %v1728, 0.0004427343
        %v1730 = vsel %vm1729, %v1727, %v1724
        %v1731 = vadd.f32 %v1140, 1.0
        %v1732 = vlog2.pop %v1731
        %v1733 = vmul.f32 %v1732, 0.6931472
        %v1734 = vmul.f32 -0.5, %v1140
        %v1735 = vadd.f32 %v1734, 1.0
        %v1736 = vmul.f32 %v1735, %v1140
        %v1737 = vand.u32 2147483647, %v1140
        %vm1738 = vcmp.lt.f32.partialorder %v1737, 0.0004427343
        %v1739 = vsel %vm1738, %v1736, %v1733
        %v1740 = vadd.f32 %v1142, 1.0
        %v1741 = vlog2.pop %v1740
        %v1742 = vmul.f32 %v1741, 0.6931472
        %v1743 = vmul.f32 -0.5, %v1142
        %v1744 = vadd.f32 %v1743, 1.0
        %v1745 = vmul.f32 %v1744, %v1142
        %v1746 = vand.u32 2147483647, %v1142
        %vm1747 = vcmp.lt.f32.partialorder %v1746, 0.0004427343
        %v1748 = vsel %vm1747, %v1745, %v1742
        %v1749 = vadd.f32 %v1144, 1.0
        %v1750 = vlog2.pop %v1749
        %v1751 = vmul.f32 %v1750, 0.6931472
        %v1752 = vmul.f32 -0.5, %v1144
        %v1753 = vadd.f32 %v1752, 1.0
        %v1754 = vmul.f32 %v1753, %v1144
        %v1755 = vand.u32 2147483647, %v1144
        %vm1756 = vcmp.lt.f32.partialorder %v1755, 0.0004427343
        %v1757 = vsel %vm1756, %v1754, %v1751
        %v1758 = vadd.f32 %v1146, 1.0
        %v1759 = vlog2.pop %v1758
        %v1760 = vmul.f32 %v1759, 0.6931472
        %v1761 = vmul.f32 -0.5, %v1146
        %v1762 = vadd.f32 %v1761, 1.0
        %v1763 = vmul.f32 %v1762, %v1146
        %v1764 = vand.u32 2147483647, %v1146
        %vm1765 = vcmp.lt.f32.partialorder %v1764, 0.0004427343
        %v1766 = vsel %vm1765, %v1763, %v1760
        %v1767 = vadd.f32 %v1148, 1.0
        %v1768 = vlog2.pop %v1767
        %v1769 = vmul.f32 %v1768, 0.6931472
        %v1770 = vmul.f32 -0.5, %v1148
        %v1771 = vadd.f32 %v1770, 1.0
        %v1772 = vmul.f32 %v1771, %v1148
        %v1773 = vand.u32 2147483647, %v1148
        %vm1774 = vcmp.lt.f32.partialorder %v1773, 0.0004427343
        %v1775 = vsel %vm1774, %v1772, %v1769
        %v1776 = vadd.f32 %v1150, 1.0
        %v1777 = vlog2.pop %v1776
        %v1778 = vmul.f32 %v1777, 0.6931472
        %v1779 = vmul.f32 -0.5, %v1150
        %v1780 = vadd.f32 %v1779, 1.0
        %v1781 = vmul.f32 %v1780, %v1150
        %v1782 = vand.u32 2147483647, %v1150
        %vm1783 = vcmp.lt.f32.partialorder %v1782, 0.0004427343
        %v1784 = vsel %vm1783, %v1781, %v1778
        %v1785 = vadd.f32 %v1152, 1.0
        %v1786 = vlog2.pop %v1785
        %v1787 = vmul.f32 %v1786, 0.6931472
        %v1788 = vmul.f32 -0.5, %v1152
        %v1789 = vadd.f32 %v1788, 1.0
        %v1790 = vmul.f32 %v1789, %v1152
        %v1791 = vand.u32 2147483647, %v1152
        %vm1792 = vcmp.lt.f32.partialorder %v1791, 0.0004427343
        %v1793 = vsel %vm1792, %v1790, %v1787
        %v1794 = vadd.f32 %v1154, 1.0
        %v1795 = vlog2.pop %v1794
        %v1796 = vmul.f32 %v1795, 0.6931472
        %v1797 = vmul.f32 -0.5, %v1154
        %v1798 = vadd.f32 %v1797, 1.0
        %v1799 = vmul.f32 %v1798, %v1154
        %v1800 = vand.u32 2147483647, %v1154
        %vm1801 = vcmp.lt.f32.partialorder %v1800, 0.0004427343
        %v1802 = vsel %vm1801, %v1799, %v1796
        %v1803 = vadd.f32 %v1156, 1.0
        %v1804 = vlog2.pop %v1803
        %v1805 = vmul.f32 %v1804, 0.6931472
        %v1806 = vmul.f32 -0.5, %v1156
        %v1807 = vadd.f32 %v1806, 1.0
        %v1808 = vmul.f32 %v1807, %v1156
        %v1809 = vand.u32 2147483647, %v1156
        %vm1810 = vcmp.lt.f32.partialorder %v1809, 0.0004427343
        %v1811 = vsel %vm1810, %v1808, %v1805
        %v1812 = vadd.f32 %v1158, 1.0
        %v1813 = vlog2.pop %v1812
        %v1814 = vmul.f32 %v1813, 0.6931472
        %v1815 = vmul.f32 -0.5, %v1158
        %v1816 = vadd.f32 %v1815, 1.0
        %v1817 = vmul.f32 %v1816, %v1158
        %v1818 = vand.u32 2147483647, %v1158
        %vm1819 = vcmp.lt.f32.partialorder %v1818, 0.0004427343
        %v1820 = vsel %vm1819, %v1817, %v1814
        %v1821 = vadd.f32 %v1160, 1.0
        %v1822 = vlog2.pop %v1821
        %v1823 = vmul.f32 %v1822, 0.6931472
        %v1824 = vmul.f32 -0.5, %v1160
        %v1825 = vadd.f32 %v1824, 1.0
        %v1826 = vmul.f32 %v1825, %v1160
        %v1827 = vand.u32 2147483647, %v1160
        %vm1828 = vcmp.lt.f32.partialorder %v1827, 0.0004427343
        %v1829 = vsel %vm1828, %v1826, %v1823
        %v1830 = vadd.f32 %v1162, 1.0
        %v1831 = vlog2.pop %v1830
        %v1832 = vmul.f32 %v1831, 0.6931472
        %v1833 = vmul.f32 -0.5, %v1162
        %v1834 = vadd.f32 %v1833, 1.0
        %v1835 = vmul.f32 %v1834, %v1162
        %v1836 = vand.u32 2147483647, %v1162
        %vm1837 = vcmp.lt.f32.partialorder %v1836, 0.0004427343
        %v1838 = vsel %vm1837, %v1835, %v1832
        %v1839 = vadd.f32 %v1164, 1.0
        %v1840 = vlog2.pop %v1839
        %v1841 = vmul.f32 %v1840, 0.6931472
        %v1842 = vmul.f32 -0.5, %v1164
        %v1843 = vadd.f32 %v1842, 1.0
        %v1844 = vmul.f32 %v1843, %v1164
        %v1845 = vand.u32 2147483647, %v1164
        %vm1846 = vcmp.lt.f32.partialorder %v1845, 0.0004427343
        %v1847 = vsel %vm1846, %v1844, %v1841
        %v1848 = vadd.f32 %v1166, 1.0
        %v1849 = vlog2.pop %v1848
        %v1850 = vmul.f32 %v1849, 0.6931472
        %v1851 = vmul.f32 -0.5, %v1166
        %v1852 = vadd.f32 %v1851, 1.0
        %v1853 = vmul.f32 %v1852, %v1166
        %v1854 = vand.u32 2147483647, %v1166
        %vm1855 = vcmp.lt.f32.partialorder %v1854, 0.0004427343
        %v1856 = vsel %vm1855, %v1853, %v1850
        %v1857 = vadd.f32 %v1168, 1.0
        %v1858 = vlog2.pop %v1857
        %v1859 = vmul.f32 %v1858, 0.6931472
        %v1860 = vmul.f32 -0.5, %v1168
        %v1861 = vadd.f32 %v1860, 1.0
        %v1862 = vmul.f32 %v1861, %v1168
        %v1863 = vand.u32 2147483647, %v1168
        %vm1864 = vcmp.lt.f32.partialorder %v1863, 0.0004427343
        %v1865 = vsel %vm1864, %v1862, %v1859
        %v1866 = vadd.f32 %v1170, 1.0
        %v1867 = vlog2.pop %v1866
        %v1868 = vmul.f32 %v1867, 0.6931472
        %v1869 = vmul.f32 -0.5, %v1170
        %v1870 = vadd.f32 %v1869, 1.0
        %v1871 = vmul.f32 %v1870, %v1170
        %v1872 = vand.u32 2147483647, %v1170
        %vm1873 = vcmp.lt.f32.partialorder %v1872, 0.0004427343
        %v1874 = vsel %vm1873, %v1871, %v1868
        %v1875 = vadd.f32 %v1172, 1.0
        %v1876 = vlog2.pop %v1875
        %v1877 = vmul.f32 %v1876, 0.6931472
        %v1878 = vmul.f32 -0.5, %v1172
        %v1879 = vadd.f32 %v1878, 1.0
        %v1880 = vmul.f32 %v1879, %v1172
        %v1881 = vand.u32 2147483647, %v1172
        %vm1882 = vcmp.lt.f32.partialorder %v1881, 0.0004427343
        %v1883 = vsel %vm1882, %v1880, %v1877
        %v1884 = vadd.f32 %v1174, 1.0
        %v1885 = vlog2.pop %v1884
        %v1886 = vmul.f32 %v1885, 0.6931472
        %v1887 = vmul.f32 -0.5, %v1174
        %v1888 = vadd.f32 %v1887, 1.0
        %v1889 = vmul.f32 %v1888, %v1174
        %v1890 = vand.u32 2147483647, %v1174
        %vm1891 = vcmp.lt.f32.partialorder %v1890, 0.0004427343
        %v1892 = vsel %vm1891, %v1889, %v1886
        %v1893 = vadd.f32 %v1176, 1.0
        %v1894 = vlog2.pop %v1893
        %v1895 = vmul.f32 %v1894, 0.6931472
        %v1896 = vmul.f32 -0.5, %v1176
        %v1897 = vadd.f32 %v1896, 1.0
        %v1898 = vmul.f32 %v1897, %v1176
        %v1899 = vand.u32 2147483647, %v1176
        %vm1900 = vcmp.lt.f32.partialorder %v1899, 0.0004427343
        %v1901 = vsel %vm1900, %v1898, %v1895
        %v1902 = vadd.f32 %v1178, 1.0
        %v1903 = vlog2.pop %v1902
        %v1904 = vmul.f32 %v1903, 0.6931472
        %v1905 = vmul.f32 -0.5, %v1178
        %v1906 = vadd.f32 %v1905, 1.0
        %v1907 = vmul.f32 %v1906, %v1178
        %v1908 = vand.u32 2147483647, %v1178
        %vm1909 = vcmp.lt.f32.partialorder %v1908, 0.0004427343
        %v1910 = vsel %vm1909, %v1907, %v1904
        %v1911 = vadd.f32 %v1180, 1.0
        %v1912 = vlog2.pop %v1911
        %v1913 = vmul.f32 %v1912, 0.6931472
        %v1914 = vmul.f32 -0.5, %v1180
        %v1915 = vadd.f32 %v1914, 1.0
        %v1916 = vmul.f32 %v1915, %v1180
        %v1917 = vand.u32 2147483647, %v1180
        %vm1918 = vcmp.lt.f32.partialorder %v1917, 0.0004427343
        %v1919 = vsel %vm1918, %v1916, %v1913
        %v1920 = vadd.f32 %v1182, 1.0
        %v1921 = vlog2.pop %v1920
        %v1922 = vmul.f32 %v1921, 0.6931472
        %v1923 = vmul.f32 -0.5, %v1182
        %v1924 = vadd.f32 %v1923, 1.0
        %v1925 = vmul.f32 %v1924, %v1182
        %v1926 = vand.u32 2147483647, %v1182
        %vm1927 = vcmp.lt.f32.partialorder %v1926, 0.0004427343
        %v1928 = vsel %vm1927, %v1925, %v1922
        %v1929 = vadd.f32 %v1184, 1.0
        %v1930 = vlog2.pop %v1929
        %v1931 = vmul.f32 %v1930, 0.6931472
        %v1932 = vmul.f32 -0.5, %v1184
        %v1933 = vadd.f32 %v1932, 1.0
        %v1934 = vmul.f32 %v1933, %v1184
        %v1935 = vand.u32 2147483647, %v1184
        %vm1936 = vcmp.lt.f32.partialorder %v1935, 0.0004427343
        %v1937 = vsel %vm1936, %v1934, %v1931
        %v1938 = vadd.f32 %v1186, 1.0
        %v1939 = vlog2.pop %v1938
        %v1940 = vmul.f32 %v1939, 0.6931472
        %v1941 = vmul.f32 -0.5, %v1186
        %v1942 = vadd.f32 %v1941, 1.0
        %v1943 = vmul.f32 %v1942, %v1186
        %v1944 = vand.u32 2147483647, %v1186
        %vm1945 = vcmp.lt.f32.partialorder %v1944, 0.0004427343
        %v1946 = vsel %vm1945, %v1943, %v1940
        %v1947 = vadd.f32 %v1188, 1.0
        %v1948 = vlog2.pop %v1947
        %v1949 = vmul.f32 %v1948, 0.6931472
        %v1950 = vmul.f32 -0.5, %v1188
        %v1951 = vadd.f32 %v1950, 1.0
        %v1952 = vmul.f32 %v1951, %v1188
        %v1953 = vand.u32 2147483647, %v1188
        %vm1954 = vcmp.lt.f32.partialorder %v1953, 0.0004427343
        %v1955 = vsel %vm1954, %v1952, %v1949
        %v1956 = vadd.f32 %v1190, 1.0
        %v1957 = vlog2.pop %v1956
        %v1958 = vmul.f32 %v1957, 0.6931472
        %v1959 = vmul.f32 -0.5, %v1190
        %v1960 = vadd.f32 %v1959, 1.0
        %v1961 = vmul.f32 %v1960, %v1190
        %v1962 = vand.u32 2147483647, %v1190
        %vm1963 = vcmp.lt.f32.partialorder %v1962, 0.0004427343
        %v1964 = vsel %vm1963, %v1961, %v1958
        %v1965 = vadd.f32 %v1192, 1.0
        %v1966 = vlog2.pop %v1965
        %v1967 = vmul.f32 %v1966, 0.6931472
        %v1968 = vmul.f32 -0.5, %v1192
        %v1969 = vadd.f32 %v1968, 1.0
        %v1970 = vmul.f32 %v1969, %v1192
        %v1971 = vand.u32 2147483647, %v1192
        %vm1972 = vcmp.lt.f32.partialorder %v1971, 0.0004427343
        %v1973 = vsel %vm1972, %v1970, %v1967
        %v1974 = vadd.f32 %v1194, 1.0
        %v1975 = vlog2.pop %v1974
        %v1976 = vmul.f32 %v1975, 0.6931472
        %v1977 = vmul.f32 -0.5, %v1194
        %v1978 = vadd.f32 %v1977, 1.0
        %v1979 = vmul.f32 %v1978, %v1194
        %v1980 = vand.u32 2147483647, %v1194
        %vm1981 = vcmp.lt.f32.partialorder %v1980, 0.0004427343
        %v1982 = vsel %vm1981, %v1979, %v1976
        %v1983 = vadd.f32 %v1196, 1.0
        %v1984 = vlog2.pop %v1983
        %v1985 = vmul.f32 %v1984, 0.6931472
        %v1986 = vmul.f32 -0.5, %v1196
        %v1987 = vadd.f32 %v1986, 1.0
        %v1988 = vmul.f32 %v1987, %v1196
        %v1989 = vand.u32 2147483647, %v1196
        %vm1990 = vcmp.lt.f32.partialorder %v1989, 0.0004427343
        %v1991 = vsel %vm1990, %v1988, %v1985
        %v1992 = vadd.f32 %v1198, 1.0
        %v1993 = vlog2.pop %v1992
        %v1994 = vmul.f32 %v1993, 0.6931472
        %v1995 = vmul.f32 -0.5, %v1198
        %v1996 = vadd.f32 %v1995, 1.0
        %v1997 = vmul.f32 %v1996, %v1198
        %v1998 = vand.u32 2147483647, %v1198
        %vm1999 = vcmp.lt.f32.partialorder %v1998, 0.0004427343
        %v2000 = vsel %vm1999, %v1997, %v1994
        %v2001 = vadd.f32 %v1200, 1.0
        %v2002 = vlog2.pop %v2001
        %v2003 = vmul.f32 %v2002, 0.6931472
        %v2004 = vmul.f32 -0.5, %v1200
        %v2005 = vadd.f32 %v2004, 1.0
        %v2006 = vmul.f32 %v2005, %v1200
        %v2007 = vand.u32 2147483647, %v1200
        %vm2008 = vcmp.lt.f32.partialorder %v2007, 0.0004427343
        %v2009 = vsel %vm2008, %v2006, %v2003
        %v2010 = vadd.f32 %v1202, 1.0
        %v2011 = vlog2.pop %v2010
        %v2012 = vmul.f32 %v2011, 0.6931472
        %v2013 = vmul.f32 -0.5, %v1202
        %v2014 = vadd.f32 %v2013, 1.0
        %v2015 = vmul.f32 %v2014, %v1202
        %v2016 = vand.u32 2147483647, %v1202
        %vm2017 = vcmp.lt.f32.partialorder %v2016, 0.0004427343
        %v2018 = vsel %vm2017, %v2015, %v2012
        %v2019 = vadd.f32 %v1204, 1.0
        %v2020 = vlog2.pop %v2019
        %v2021 = vmul.f32 %v2020, 0.6931472
        %v2022 = vmul.f32 -0.5, %v1204
        %v2023 = vadd.f32 %v2022, 1.0
        %v2024 = vmul.f32 %v2023, %v1204
        %v2025 = vand.u32 2147483647, %v1204
        %vm2026 = vcmp.lt.f32.partialorder %v2025, 0.0004427343
        %v2027 = vsel %vm2026, %v2024, %v2021
        %v2028 = vadd.f32 %v1206, 1.0
        %v2029 = vlog2.pop %v2028
        %v2030 = vmul.f32 %v2029, 0.6931472
        %v2031 = vmul.f32 -0.5, %v1206
        %v2032 = vadd.f32 %v2031, 1.0
        %v2033 = vmul.f32 %v2032, %v1206
        %v2034 = vand.u32 2147483647, %v1206
        %vm2035 = vcmp.lt.f32.partialorder %v2034, 0.0004427343
        %v2036 = vsel %vm2035, %v2033, %v2030
        %v2037 = vadd.f32 %v1208, 1.0
        %v2038 = vlog2.pop %v2037
        %v2039 = vmul.f32 %v2038, 0.6931472
        %v2040 = vmul.f32 -0.5, %v1208
        %v2041 = vadd.f32 %v2040, 1.0
        %v2042 = vmul.f32 %v2041, %v1208
        %v2043 = vand.u32 2147483647, %v1208
        %vm2044 = vcmp.lt.f32.partialorder %v2043, 0.0004427343
        %v2045 = vsel %vm2044, %v2042, %v2039
        %v2046 = vadd.f32 %v1210, 1.0
        %v2047 = vlog2.pop %v2046
        %v2048 = vmul.f32 %v2047, 0.6931472
        %v2049 = vmul.f32 -0.5, %v1210
        %v2050 = vadd.f32 %v2049, 1.0
        %v2051 = vmul.f32 %v2050, %v1210
        %v2052 = vand.u32 2147483647, %v1210
        %vm2053 = vcmp.lt.f32.partialorder %v2052, 0.0004427343
        %v2054 = vsel %vm2053, %v2051, %v2048
        %v2055 = vadd.f32 %v1212, 1.0
        %v2056 = vlog2.pop %v2055
        %v2057 = vmul.f32 %v2056, 0.6931472
        %v2058 = vmul.f32 -0.5, %v1212
        %v2059 = vadd.f32 %v2058, 1.0
        %v2060 = vmul.f32 %v2059, %v1212
        %v2061 = vand.u32 2147483647, %v1212
        %vm2062 = vcmp.lt.f32.partialorder %v2061, 0.0004427343
        %v2063 = vsel %vm2062, %v2060, %v2057
        %v2064 = vadd.f32 %v1214, 1.0
        %v2065 = vlog2.pop %v2064
        %v2066 = vmul.f32 %v2065, 0.6931472
        %v2067 = vmul.f32 -0.5, %v1214
        %v2068 = vadd.f32 %v2067, 1.0
        %v2069 = vmul.f32 %v2068, %v1214
        %v2070 = vand.u32 2147483647, %v1214
        %vm2071 = vcmp.lt.f32.partialorder %v2070, 0.0004427343
        %v2072 = vsel %vm2071, %v2069, %v2066
        %v2073 = vadd.f32 %v1216, 1.0
        %v2074 = vlog2.pop %v2073
        %v2075 = vmul.f32 %v2074, 0.6931472
        %v2076 = vmul.f32 -0.5, %v1216
        %v2077 = vadd.f32 %v2076, 1.0
        %v2078 = vmul.f32 %v2077, %v1216
        %v2079 = vand.u32 2147483647, %v1216
        %vm2080 = vcmp.lt.f32.partialorder %v2079, 0.0004427343
        %v2081 = vsel %vm2080, %v2078, %v2075
        %v2082 = vadd.f32 %v1218, 1.0
        %v2083 = vlog2.pop %v2082
        %v2084 = vmul.f32 %v2083, 0.6931472
        %v2085 = vmul.f32 -0.5, %v1218
        %v2086 = vadd.f32 %v2085, 1.0
        %v2087 = vmul.f32 %v2086, %v1218
        %v2088 = vand.u32 2147483647, %v1218
        %vm2089 = vcmp.lt.f32.partialorder %v2088, 0.0004427343
        %v2090 = vsel %vm2089, %v2087, %v2084
        %v2091 = vadd.f32 %v1220, 1.0
        %v2092 = vlog2.pop %v2091
        %v2093 = vmul.f32 %v2092, 0.6931472
        %v2094 = vmul.f32 -0.5, %v1220
        %v2095 = vadd.f32 %v2094, 1.0
        %v2096 = vmul.f32 %v2095, %v1220
        %v2097 = vand.u32 2147483647, %v1220
        %vm2098 = vcmp.lt.f32.partialorder %v2097, 0.0004427343
        %v2099 = vsel %vm2098, %v2096, %v2093
        %v2100 = vadd.f32 %v1222, 1.0
        %v2101 = vlog2.pop %v2100
        %v2102 = vmul.f32 %v2101, 0.6931472
        %v2103 = vmul.f32 -0.5, %v1222
        %v2104 = vadd.f32 %v2103, 1.0
        %v2105 = vmul.f32 %v2104, %v1222
        %v2106 = vand.u32 2147483647, %v1222
        %vm2107 = vcmp.lt.f32.partialorder %v2106, 0.0004427343
        %v2108 = vsel %vm2107, %v2105, %v2102
        %v2109 = vadd.f32 %v1224, 1.0
        %v2110 = vlog2.pop %v2109
        %v2111 = vmul.f32 %v2110, 0.6931472
        %v2112 = vmul.f32 -0.5, %v1224
        %v2113 = vadd.f32 %v2112, 1.0
        %v2114 = vmul.f32 %v2113, %v1224
        %v2115 = vand.u32 2147483647, %v1224
        %vm2116 = vcmp.lt.f32.partialorder %v2115, 0.0004427343
        %v2117 = vsel %vm2116, %v2114, %v2111
        %v2118 = vadd.f32 %v1226, 1.0
        %v2119 = vlog2.pop %v2118
        %v2120 = vmul.f32 %v2119, 0.6931472
        %v2121 = vmul.f32 -0.5, %v1226
        %v2122 = vadd.f32 %v2121, 1.0
        %v2123 = vmul.f32 %v2122, %v1226
        %v2124 = vand.u32 2147483647, %v1226
        %vm2125 = vcmp.lt.f32.partialorder %v2124, 0.0004427343
        %v2126 = vsel %vm2125, %v2123, %v2120
        %v2127 = vadd.f32 %v1228, 1.0
        %v2128 = vlog2.pop %v2127
        %v2129 = vmul.f32 %v2128, 0.6931472
        %v2130 = vmul.f32 -0.5, %v1228
        %v2131 = vadd.f32 %v2130, 1.0
        %v2132 = vmul.f32 %v2131, %v1228
        %v2133 = vand.u32 2147483647, %v1228
        %vm2134 = vcmp.lt.f32.partialorder %v2133, 0.0004427343
        %v2135 = vsel %vm2134, %v2132, %v2129
        %v2136 = vadd.f32 %v1230, 1.0
        %v2137 = vlog2.pop %v2136
        %v2138 = vmul.f32 %v2137, 0.6931472
        %v2139 = vmul.f32 -0.5, %v1230
        %v2140 = vadd.f32 %v2139, 1.0
        %v2141 = vmul.f32 %v2140, %v1230
        %v2142 = vand.u32 2147483647, %v1230
        %vm2143 = vcmp.lt.f32.partialorder %v2142, 0.0004427343
        %v2144 = vsel %vm2143, %v2141, %v2138
        %v2145 = vadd.f32 %v1232, 1.0
        %v2146 = vlog2.pop %v2145
        %v2147 = vmul.f32 %v2146, 0.6931472
        %v2148 = vmul.f32 -0.5, %v1232
        %v2149 = vadd.f32 %v2148, 1.0
        %v2150 = vmul.f32 %v2149, %v1232
        %v2151 = vand.u32 2147483647, %v1232
        %vm2152 = vcmp.lt.f32.partialorder %v2151, 0.0004427343
        %v2153 = vsel %vm2152, %v2150, %v2147
        %v2154 = vadd.f32 %v1234, 1.0
        %v2155 = vlog2.pop %v2154
        %v2156 = vmul.f32 %v2155, 0.6931472
        %v2157 = vmul.f32 -0.5, %v1234
        %v2158 = vadd.f32 %v2157, 1.0
        %v2159 = vmul.f32 %v2158, %v1234
        %v2160 = vand.u32 2147483647, %v1234
        %vm2161 = vcmp.lt.f32.partialorder %v2160, 0.0004427343
        %v2162 = vsel %vm2161, %v2159, %v2156
        %v2163 = vadd.f32 %v1236, 1.0
        %v2164 = vlog2.pop %v2163
        %v2165 = vmul.f32 %v2164, 0.6931472
        %v2166 = vmul.f32 -0.5, %v1236
        %v2167 = vadd.f32 %v2166, 1.0
        %v2168 = vmul.f32 %v2167, %v1236
        %v2169 = vand.u32 2147483647, %v1236
        %vm2170 = vcmp.lt.f32.partialorder %v2169, 0.0004427343
        %v2171 = vsel %vm2170, %v2168, %v2165
        %v2172 = vadd.f32 %v1238, 1.0
        %v2173 = vlog2.pop %v2172
        %v2174 = vmul.f32 %v2173, 0.6931472
        %v2175 = vmul.f32 -0.5, %v1238
        %v2176 = vadd.f32 %v2175, 1.0
        %v2177 = vmul.f32 %v2176, %v1238
        %v2178 = vand.u32 2147483647, %v1238
        %vm2179 = vcmp.lt.f32.partialorder %v2178, 0.0004427343
        %v2180 = vsel %vm2179, %v2177, %v2174
        %v2181 = vadd.f32 %v1240, 1.0
        %v2182 = vlog2.pop %v2181
        %v2183 = vmul.f32 %v2182, 0.6931472
        %v2184 = vmul.f32 -0.5, %v1240
        %v2185 = vadd.f32 %v2184, 1.0
        %v2186 = vmul.f32 %v2185, %v1240
        %v2187 = vand.u32 2147483647, %v1240
        %vm2188 = vcmp.lt.f32.partialorder %v2187, 0.0004427343
        %v2189 = vsel %vm2188, %v2186, %v2183
        %v2190 = vadd.f32 %v1242, 1.0
        %v2191 = vlog2.pop %v2190
        %v2192 = vmul.f32 %v2191, 0.6931472
        %v2193 = vmul.f32 -0.5, %v1242
        %v2194 = vadd.f32 %v2193, 1.0
        %v2195 = vmul.f32 %v2194, %v1242
        %v2196 = vand.u32 2147483647, %v1242
        %vm2197 = vcmp.lt.f32.partialorder %v2196, 0.0004427343
        %v2198 = vsel %vm2197, %v2195, %v2192
        %v2199 = vadd.f32 %v1244, 1.0
        %v2200 = vlog2.pop %v2199
        %v2201 = vmul.f32 %v2200, 0.6931472
        %v2202 = vmul.f32 -0.5, %v1244
        %v2203 = vadd.f32 %v2202, 1.0
        %v2204 = vmul.f32 %v2203, %v1244
        %v2205 = vand.u32 2147483647, %v1244
        %vm2206 = vcmp.lt.f32.partialorder %v2205, 0.0004427343
        %v2207 = vsel %vm2206, %v2204, %v2201
        %v2208 = vadd.f32 %v1246, 1.0
        %v2209 = vlog2.pop %v2208
        %v2210 = vmul.f32 %v2209, 0.6931472
        %v2211 = vmul.f32 -0.5, %v1246
        %v2212 = vadd.f32 %v2211, 1.0
        %v2213 = vmul.f32 %v2212, %v1246
        %v2214 = vand.u32 2147483647, %v1246
        %vm2215 = vcmp.lt.f32.partialorder %v2214, 0.0004427343
        %v2216 = vsel %vm2215, %v2213, %v2210
        %v2217 = vadd.f32 %v1248, 1.0
        %v2218 = vlog2.pop %v2217
        %v2219 = vmul.f32 %v2218, 0.6931472
        %v2220 = vmul.f32 -0.5, %v1248
        %v2221 = vadd.f32 %v2220, 1.0
        %v2222 = vmul.f32 %v2221, %v1248
        %v2223 = vand.u32 2147483647, %v1248
        %vm2224 = vcmp.lt.f32.partialorder %v2223, 0.0004427343
        %v2225 = vsel %vm2224, %v2222, %v2219
        %v2226 = vadd.f32 %v1250, 1.0
        %v2227 = vlog2.pop %v2226
        %v2228 = vmul.f32 %v2227, 0.6931472
        %v2229 = vmul.f32 -0.5, %v1250
        %v2230 = vadd.f32 %v2229, 1.0
        %v2231 = vmul.f32 %v2230, %v1250
        %v2232 = vand.u32 2147483647, %v1250
        %vm2233 = vcmp.lt.f32.partialorder %v2232, 0.0004427343
        %v2234 = vsel %vm2233, %v2231, %v2228
        %v2235 = vadd.f32 %v1252, 1.0
        %v2236 = vlog2.pop %v2235
        %v2237 = vmul.f32 %v2236, 0.6931472
        %v2238 = vmul.f32 -0.5, %v1252
        %v2239 = vadd.f32 %v2238, 1.0
        %v2240 = vmul.f32 %v2239, %v1252
        %v2241 = vand.u32 2147483647, %v1252
        %vm2242 = vcmp.lt.f32.partialorder %v2241, 0.0004427343
        %v2243 = vsel %vm2242, %v2240, %v2237
        %v2244 = vadd.f32 %v1254, 1.0
        %v2245 = vlog2.pop %v2244
        %v2246 = vmul.f32 %v2245, 0.6931472
        %v2247 = vmul.f32 -0.5, %v1254
        %v2248 = vadd.f32 %v2247, 1.0
        %v2249 = vmul.f32 %v2248, %v1254
        %v2250 = vand.u32 2147483647, %v1254
        %vm2251 = vcmp.lt.f32.partialorder %v2250, 0.0004427343
        %v2252 = vsel %vm2251, %v2249, %v2246
        %v2253 = vadd.f32 %v1256, 1.0
        %v2254 = vlog2.pop %v2253
        %v2255 = vmul.f32 %v2254, 0.6931472
        %v2256 = vmul.f32 -0.5, %v1256
        %v2257 = vadd.f32 %v2256, 1.0
        %v2258 = vmul.f32 %v2257, %v1256
        %v2259 = vand.u32 2147483647, %v1256
        %vm2260 = vcmp.lt.f32.partialorder %v2259, 0.0004427343
        %v2261 = vsel %vm2260, %v2258, %v2255
        %v2262 = vadd.f32 %v1258, 1.0
        %v2263 = vlog2.pop %v2262
        %v2264 = vmul.f32 %v2263, 0.6931472
        %v2265 = vmul.f32 -0.5, %v1258
        %v2266 = vadd.f32 %v2265, 1.0
        %v2267 = vmul.f32 %v2266, %v1258
        %v2268 = vand.u32 2147483647, %v1258
        %vm2269 = vcmp.lt.f32.partialorder %v2268, 0.0004427343
        %v2270 = vsel %vm2269, %v2267, %v2264
        %v2271 = vadd.f32 %v1260, 1.0
        %v2272 = vlog2.pop %v2271
        %v2273 = vmul.f32 %v2272, 0.6931472
        %v2274 = vmul.f32 -0.5, %v1260
        %v2275 = vadd.f32 %v2274, 1.0
        %v2276 = vmul.f32 %v2275, %v1260
        %v2277 = vand.u32 2147483647, %v1260
        %vm2278 = vcmp.lt.f32.partialorder %v2277, 0.0004427343
        %v2279 = vsel %vm2278, %v2276, %v2273
        %v2280 = vadd.f32 %v1262, 1.0
        %v2281 = vlog2.pop %v2280
        %v2282 = vmul.f32 %v2281, 0.6931472
        %v2283 = vmul.f32 -0.5, %v1262
        %v2284 = vadd.f32 %v2283, 1.0
        %v2285 = vmul.f32 %v2284, %v1262
        %v2286 = vand.u32 2147483647, %v1262
        %vm2287 = vcmp.lt.f32.partialorder %v2286, 0.0004427343
        %v2288 = vsel %vm2287, %v2285, %v2282
        %v2289 = vadd.f32 %v1264, 1.0
        %v2290 = vlog2.pop %v2289
        %v2291 = vmul.f32 %v2290, 0.6931472
        %v2292 = vmul.f32 -0.5, %v1264
        %v2293 = vadd.f32 %v2292, 1.0
        %v2294 = vmul.f32 %v2293, %v1264
        %v2295 = vand.u32 2147483647, %v1264
        %vm2296 = vcmp.lt.f32.partialorder %v2295, 0.0004427343
        %v2297 = vsel %vm2296, %v2294, %v2291
        %v2298 = vadd.f32 %v1266, 1.0
        %v2299 = vlog2.pop %v2298
        %v2300 = vmul.f32 %v2299, 0.6931472
        %v2301 = vmul.f32 -0.5, %v1266
        %v2302 = vadd.f32 %v2301, 1.0
        %v2303 = vmul.f32 %v2302, %v1266
        %v2304 = vand.u32 2147483647, %v1266
        %vm2305 = vcmp.lt.f32.partialorder %v2304, 0.0004427343
        %v2306 = vsel %vm2305, %v2303, %v2300
        %v2307 = vadd.f32 %v1268, 1.0
        %v2308 = vlog2.pop %v2307
        %v2309 = vmul.f32 %v2308, 0.6931472
        %v2310 = vmul.f32 -0.5, %v1268
        %v2311 = vadd.f32 %v2310, 1.0
        %v2312 = vmul.f32 %v2311, %v1268
        %v2313 = vand.u32 2147483647, %v1268
        %vm2314 = vcmp.lt.f32.partialorder %v2313, 0.0004427343
        %v2315 = vsel %vm2314, %v2312, %v2309
        %v2316 = vadd.f32 %v1270, 1.0
        %v2317 = vlog2.pop %v2316
        %v2318 = vmul.f32 %v2317, 0.6931472
        %v2319 = vmul.f32 -0.5, %v1270
        %v2320 = vadd.f32 %v2319, 1.0
        %v2321 = vmul.f32 %v2320, %v1270
        %v2322 = vand.u32 2147483647, %v1270
        %vm2323 = vcmp.lt.f32.partialorder %v2322, 0.0004427343
        %v2324 = vsel %vm2323, %v2321, %v2318
        %v2325 = vadd.f32 %v1272, 1.0
        %v2326 = vlog2.pop %v2325
        %v2327 = vmul.f32 %v2326, 0.6931472
        %v2328 = vmul.f32 -0.5, %v1272
        %v2329 = vadd.f32 %v2328, 1.0
        %v2330 = vmul.f32 %v2329, %v1272
        %v2331 = vand.u32 2147483647, %v1272
        %vm2332 = vcmp.lt.f32.partialorder %v2331, 0.0004427343
        %v2333 = vsel %vm2332, %v2330, %v2327
        %v2334 = vadd.f32 %v1274, 1.0
        %v2335 = vlog2.pop %v2334
        %v2336 = vmul.f32 %v2335, 0.6931472
        %v2337 = vmul.f32 -0.5, %v1274
        %v2338 = vadd.f32 %v2337, 1.0
        %v2339 = vmul.f32 %v2338, %v1274
        %v2340 = vand.u32 2147483647, %v1274
        %vm2341 = vcmp.lt.f32.partialorder %v2340, 0.0004427343
        %v2342 = vsel %vm2341, %v2339, %v2336
        %v2343 = vadd.f32 %v1276, 1.0
        %v2344 = vlog2.pop %v2343
        %v2345 = vmul.f32 %v2344, 0.6931472
        %v2346 = vmul.f32 -0.5, %v1276
        %v2347 = vadd.f32 %v2346, 1.0
        %v2348 = vmul.f32 %v2347, %v1276
        %v2349 = vand.u32 2147483647, %v1276
        %vm2350 = vcmp.lt.f32.partialorder %v2349, 0.0004427343
        %v2351 = vsel %vm2350, %v2348, %v2345
        %v2352 = vadd.f32 %v1278, 1.0
        %v2353 = vlog2.pop %v2352
        %v2354 = vmul.f32 %v2353, 0.6931472
        %v2355 = vmul.f32 -0.5, %v1278
        %v2356 = vadd.f32 %v2355, 1.0
        %v2357 = vmul.f32 %v2356, %v1278
        %v2358 = vand.u32 2147483647, %v1278
        %vm2359 = vcmp.lt.f32.partialorder %v2358, 0.0004427343
        %v2360 = vsel %vm2359, %v2357, %v2354
        %v2361 = vadd.f32 %v1280, 1.0
        %v2362 = vlog2.pop %v2361
        %v2363 = vmul.f32 %v2362, 0.6931472
        %v2364 = vmul.f32 -0.5, %v1280
        %v2365 = vadd.f32 %v2364, 1.0
        %v2366 = vmul.f32 %v2365, %v1280
        %v2367 = vand.u32 2147483647, %v1280
        %vm2368 = vcmp.lt.f32.partialorder %v2367, 0.0004427343
        %v2369 = vsel %vm2368, %v2366, %v2363
        %v2370 = vadd.f32 %v1282, 1.0
        %v2371 = vlog2.pop %v2370
        %v2372 = vmul.f32 %v2371, 0.6931472
        %v2373 = vmul.f32 -0.5, %v1282
        %v2374 = vadd.f32 %v2373, 1.0
        %v2375 = vmul.f32 %v2374, %v1282
        %v2376 = vand.u32 2147483647, %v1282
        %vm2377 = vcmp.lt.f32.partialorder %v2376, 0.0004427343
        %v2378 = vsel %vm2377, %v2375, %v2372
        %v2379 = vadd.f32 %v1284, 1.0
        %v2380 = vlog2.pop %v2379
        %v2381 = vmul.f32 %v2380, 0.6931472
        %v2382 = vmul.f32 -0.5, %v1284
        %v2383 = vadd.f32 %v2382, 1.0
        %v2384 = vmul.f32 %v2383, %v1284
        %v2385 = vand.u32 2147483647, %v1284
        %vm2386 = vcmp.lt.f32.partialorder %v2385, 0.0004427343
        %v2387 = vsel %vm2386, %v2384, %v2381
        %v2388 = vadd.f32 %v1286, 1.0
        %v2389 = vlog2.pop %v2388
        %v2390 = vmul.f32 %v2389, 0.6931472
        %v2391 = vmul.f32 -0.5, %v1286
        %v2392 = vadd.f32 %v2391, 1.0
        %v2393 = vmul.f32 %v2392, %v1286
        %v2394 = vand.u32 2147483647, %v1286
        %vm2395 = vcmp.lt.f32.partialorder %v2394, 0.0004427343
        %v2396 = vsel %vm2395, %v2393, %v2390
        %v2397 = vadd.f32 %v1288, 1.0
        %v2398 = vlog2.pop %v2397
        %v2399 = vmul.f32 %v2398, 0.6931472
        %v2400 = vmul.f32 -0.5, %v1288
        %v2401 = vadd.f32 %v2400, 1.0
        %v2402 = vmul.f32 %v2401, %v1288
        %v2403 = vand.u32 2147483647, %v1288
        %vm2404 = vcmp.lt.f32.partialorder %v2403, 0.0004427343
        %v2405 = vsel %vm2404, %v2402, %v2399
        %v2406 = vadd.f32 %v1290, 1.0
        %v2407 = vlog2.pop %v2406
        %v2408 = vmul.f32 %v2407, 0.6931472
        %v2409 = vmul.f32 -0.5, %v1290
        %v2410 = vadd.f32 %v2409, 1.0
        %v2411 = vmul.f32 %v2410, %v1290
        %v2412 = vand.u32 2147483647, %v1290
        %vm2413 = vcmp.lt.f32.partialorder %v2412, 0.0004427343
        %v2414 = vsel %vm2413, %v2411, %v2408
        %v2415 = vadd.f32 %v1292, 1.0
        %v2416 = vlog2.pop %v2415
        %v2417 = vmul.f32 %v2416, 0.6931472
        %v2418 = vmul.f32 -0.5, %v1292
        %v2419 = vadd.f32 %v2418, 1.0
        %v2420 = vmul.f32 %v2419, %v1292
        %v2421 = vand.u32 2147483647, %v1292
        %vm2422 = vcmp.lt.f32.partialorder %v2421, 0.0004427343
        %v2423 = vsel %vm2422, %v2420, %v2417
        %v2424 = vadd.f32 %v1294, 1.0
        %v2425 = vlog2.pop %v2424
        %v2426 = vmul.f32 %v2425, 0.6931472
        %v2427 = vmul.f32 -0.5, %v1294
        %v2428 = vadd.f32 %v2427, 1.0
        %v2429 = vmul.f32 %v2428, %v1294
        %v2430 = vand.u32 2147483647, %v1294
        %vm2431 = vcmp.lt.f32.partialorder %v2430, 0.0004427343
        %v2432 = vsel %vm2431, %v2429, %v2426
        %v2433 = vadd.f32 %v1296, 1.0
        %v2434 = vlog2.pop %v2433
        %v2435 = vmul.f32 %v2434, 0.6931472
        %v2436 = vmul.f32 -0.5, %v1296
        %v2437 = vadd.f32 %v2436, 1.0
        %v2438 = vmul.f32 %v2437, %v1296
        %v2439 = vand.u32 2147483647, %v1296
        %vm2440 = vcmp.lt.f32.partialorder %v2439, 0.0004427343
        %v2441 = vsel %vm2440, %v2438, %v2435
        %v2442 = vadd.f32 %v1298, 1.0
        %v2443 = vlog2.pop %v2442
        %v2444 = vmul.f32 %v2443, 0.6931472
        %v2445 = vmul.f32 -0.5, %v1298
        %v2446 = vadd.f32 %v2445, 1.0
        %v2447 = vmul.f32 %v2446, %v1298
        %v2448 = vand.u32 2147483647, %v1298
        %vm2449 = vcmp.lt.f32.partialorder %v2448, 0.0004427343
        %v2450 = vsel %vm2449, %v2447, %v2444
        %v2451 = vadd.f32 %v659, %v1307
        %v2452 = vadd.f32 %v660, %v1316
        %v2453 = vadd.f32 %v661, %v1325
        %v2454 = vadd.f32 %v662, %v1334
        %v2455 = vadd.f32 %v663, %v1343
        %v2456 = vadd.f32 %v664, %v1352
        %v2457 = vadd.f32 %v665, %v1361
        %v2458 = vadd.f32 %v666, %v1370
        %v2459 = vadd.f32 %v667, %v1379
        %v2460 = vadd.f32 %v668, %v1388
        %v2461 = vadd.f32 %v669, %v1397
        %v2462 = vadd.f32 %v670, %v1406
        %v2463 = vadd.f32 %v671, %v1415
        %v2464 = vadd.f32 %v672, %v1424
        %v2465 = vadd.f32 %v673, %v1433
        %v2466 = vadd.f32 %v674, %v1442
        %v2467 = vadd.f32 %v675, %v1451
        %v2468 = vadd.f32 %v676, %v1460
        %v2469 = vadd.f32 %v677, %v1469
        %v2470 = vadd.f32 %v678, %v1478
        %v2471 = vadd.f32 %v679, %v1487
        %v2472 = vadd.f32 %v680, %v1496
        %v2473 = vadd.f32 %v681, %v1505
        %v2474 = vadd.f32 %v682, %v1514
        %v2475 = vadd.f32 %v683, %v1523
        %v2476 = vadd.f32 %v684, %v1532
        %v2477 = vadd.f32 %v685, %v1541
        %v2478 = vadd.f32 %v686, %v1550
        %v2479 = vadd.f32 %v687, %v1559
        %v2480 = vadd.f32 %v688, %v1568
        %v2481 = vadd.f32 %v689, %v1577
        %v2482 = vadd.f32 %v690, %v1586
        %v2483 = vadd.f32 %v691, %v1595
        %v2484 = vadd.f32 %v692, %v1604
        %v2485 = vadd.f32 %v693, %v1613
        %v2486 = vadd.f32 %v694, %v1622
        %v2487 = vadd.f32 %v695, %v1631
        %v2488 = vadd.f32 %v696, %v1640
        %v2489 = vadd.f32 %v697, %v1649
        %v2490 = vadd.f32 %v698, %v1658
        %v2491 = vadd.f32 %v699, %v1667
        %v2492 = vadd.f32 %v700, %v1676
        %v2493 = vadd.f32 %v701, %v1685
        %v2494 = vadd.f32 %v702, %v1694
        %v2495 = vadd.f32 %v703, %v1703
        %v2496 = vadd.f32 %v704, %v1712
        %v2497 = vadd.f32 %v705, %v1721
        %v2498 = vadd.f32 %v706, %v1730
        %v2499 = vadd.f32 %v707, %v1739
        %v2500 = vadd.f32 %v708, %v1748
        %v2501 = vadd.f32 %v709, %v1757
        %v2502 = vadd.f32 %v710, %v1766
        %v2503 = vadd.f32 %v711, %v1775
        %v2504 = vadd.f32 %v712, %v1784
        %v2505 = vadd.f32 %v713, %v1793
        %v2506 = vadd.f32 %v714, %v1802
        %v2507 = vadd.f32 %v715, %v1811
        %v2508 = vadd.f32 %v716, %v1820
        %v2509 = vadd.f32 %v717, %v1829
        %v2510 = vadd.f32 %v718, %v1838
        %v2511 = vadd.f32 %v719, %v1847
        %v2512 = vadd.f32 %v720, %v1856
        %v2513 = vadd.f32 %v721, %v1865
        %v2514 = vadd.f32 %v722, %v1874
        %v2515 = vadd.f32 %v723, %v1883
        %v2516 = vadd.f32 %v724, %v1892
        %v2517 = vadd.f32 %v725, %v1901
        %v2518 = vadd.f32 %v726, %v1910
        %v2519 = vadd.f32 %v727, %v1919
        %v2520 = vadd.f32 %v728, %v1928
        %v2521 = vadd.f32 %v729, %v1937
        %v2522 = vadd.f32 %v730, %v1946
        %v2523 = vadd.f32 %v731, %v1955
        %v2524 = vadd.f32 %v732, %v1964
        %v2525 = vadd.f32 %v733, %v1973
        %v2526 = vadd.f32 %v734, %v1982
        %v2527 = vadd.f32 %v735, %v1991
        %v2528 = vadd.f32 %v736, %v2000
        %v2529 = vadd.f32 %v737, %v2009
        %v2530 = vadd.f32 %v738, %v2018
        %v2531 = vadd.f32 %v739, %v2027
        %v2532 = vadd.f32 %v740, %v2036
        %v2533 = vadd.f32 %v741, %v2045
        %v2534 = vadd.f32 %v742, %v2054
        %v2535 = vadd.f32 %v743, %v2063
        %v2536 = vadd.f32 %v744, %v2072
        %v2537 = vadd.f32 %v745, %v2081
        %v2538 = vadd.f32 %v746, %v2090
        %v2539 = vadd.f32 %v747, %v2099
        %v2540 = vadd.f32 %v748, %v2108
        %v2541 = vadd.f32 %v749, %v2117
        %v2542 = vadd.f32 %v750, %v2126
        %v2543 = vadd.f32 %v751, %v2135
        %v2544 = vadd.f32 %v752, %v2144
        %v2545 = vadd.f32 %v753, %v2153
        %v2546 = vadd.f32 %v754, %v2162
        %v2547 = vadd.f32 %v755, %v2171
        %v2548 = vadd.f32 %v756, %v2180
        %v2549 = vadd.f32 %v757, %v2189
        %v2550 = vadd.f32 %v758, %v2198
        %v2551 = vadd.f32 %v759, %v2207
        %v2552 = vadd.f32 %v760, %v2216
        %v2553 = vadd.f32 %v761, %v2225
        %v2554 = vadd.f32 %v762, %v2234
        %v2555 = vadd.f32 %v763, %v2243
        %v2556 = vadd.f32 %v764, %v2252
        %v2557 = vadd.f32 %v765, %v2261
        %v2558 = vadd.f32 %v766, %v2270
        %v2559 = vadd.f32 %v767, %v2279
        %v2560 = vadd.f32 %v768, %v2288
        %v2561 = vadd.f32 %v769, %v2297
        %v2562 = vadd.f32 %v770, %v2306
        %v2563 = vadd.f32 %v771, %v2315
        %v2564 = vadd.f32 %v772, %v2324
        %v2565 = vadd.f32 %v773, %v2333
        %v2566 = vadd.f32 %v774, %v2342
        %v2567 = vadd.f32 %v775, %v2351
        %v2568 = vadd.f32 %v776, %v2360
        %v2569 = vadd.f32 %v777, %v2369
        %v2570 = vadd.f32 %v778, %v2378
        %v2571 = vadd.f32 %v779, %v2387
        %v2572 = vadd.f32 %v780, %v2396
        %v2573 = vadd.f32 %v781, %v2405
        %v2574 = vadd.f32 %v782, %v2414
        %v2575 = vadd.f32 %v783, %v2423
        %v2576 = vadd.f32 %v784, %v2432
        %v2577 = vadd.f32 %v785, %v2441
        %v2578 = vadd.f32 %v786, %v2450
        %v2580 = vlaneseq
        %v2581 = vshrl.u32 %v2580, 7
        %v2582 = vsub.s32 0, %v2581
        %v2583 = vrot.slane %v348, %v2582
        %v2584 = vlaneseq
        %v2585 = vshrl.u32 %v2584, 7
        %v2586 = vsub.s32 1, %v2585
        %v2587 = vrot.slane %v348, %v2586
        %2590 = vmatprep.subr.mxu0 %v2452
        %2591 = vmatpush1.msra.mxu0 %v2451
        %2592 = vmatprep.subr.mxu0 %v2456
        %2593 = vmatpush1.msra.mxu0 %v2455
        %2594 = vmatprep.subr.mxu0 %v2460
        %2595 = vmatpush1.msra.mxu0 %v2459
        %2596 = vmatprep.subr.mxu0 %v2464
        %2597 = vmatpush1.msra.mxu0 %v2463
        %2598 = vmatprep.subr.mxu0 %v2468
        %2599 = vmatpush1.msra.mxu0 %v2467
        %2600 = vmatprep.subr.mxu0 %v2472
        %2601 = vmatpush1.msra.mxu0 %v2471
        %2602 = vmatprep.subr.mxu0 %v2476
        %2603 = vmatpush1.msra.mxu0 %v2475
        %2604 = vmatprep.subr.mxu0 %v2480
        %2605 = vmatpush1.msra.mxu0 %v2479
        %2606 = vmatprep.subr.mxu0 %v2484
        %2607 = vmatpush1.msra.mxu0 %v2483
        %2608 = vmatprep.subr.mxu0 %v2488
        %2609 = vmatpush1.msra.mxu0 %v2487
        %2610 = vmatprep.subr.mxu0 %v2492
        %2611 = vmatpush1.msra.mxu0 %v2491
        %2612 = vmatprep.subr.mxu0 %v2496
        %2613 = vmatpush1.msra.mxu0 %v2495
        %2614 = vmatprep.subr.mxu0 %v2500
        %2615 = vmatpush1.msra.mxu0 %v2499
        %2616 = vmatprep.subr.mxu0 %v2504
        %2617 = vmatpush1.msra.mxu0 %v2503
        %2618 = vmatprep.subr.mxu0 %v2508
        %2619 = vmatpush1.msra.mxu0 %v2507
        %2620 = vmatprep.subr.mxu0 %v2512
        %2621 = vmatpush1.msra.mxu0 %v2511
        %2622 = vmatprep.subr.mxu0 %v2516
        %2623 = vmatpush1.msra.mxu0 %v2515
        %2624 = vmatprep.subr.mxu0 %v2520
        %2625 = vmatpush1.msra.mxu0 %v2519
        %2626 = vmatprep.subr.mxu0 %v2524
        %2627 = vmatpush1.msra.mxu0 %v2523
        %2628 = vmatprep.subr.mxu0 %v2528
        %2629 = vmatpush1.msra.mxu0 %v2527
        %2630 = vmatprep.subr.mxu0 %v2532
        %2631 = vmatpush1.msra.mxu0 %v2531
        %2632 = vmatprep.subr.mxu0 %v2536
        %2633 = vmatpush1.msra.mxu0 %v2535
        %2634 = vmatprep.subr.mxu0 %v2540
        %2635 = vmatpush1.msra.mxu0 %v2539
        %2636 = vmatprep.subr.mxu0 %v2544
        %2637 = vmatpush1.msra.mxu0 %v2543
        %2638 = vmatprep.subr.mxu0 %v2548
        %2639 = vmatpush1.msra.mxu0 %v2547
        %2640 = vmatprep.subr.mxu0 %v2552
        %2641 = vmatpush1.msra.mxu0 %v2551
        %2642 = vmatprep.subr.mxu0 %v2556
        %2643 = vmatpush1.msra.mxu0 %v2555
        %2644 = vmatprep.subr.mxu0 %v2560
        %2645 = vmatpush1.msra.mxu0 %v2559
        %2646 = vmatprep.subr.mxu0 %v2564
        %2647 = vmatpush1.msra.mxu0 %v2563
        %2648 = vmatprep.subr.mxu0 %v2568
        %2649 = vmatpush1.msra.mxu0 %v2567
        %2650 = vmatprep.subr.mxu0 %v2572
        %2651 = vmatpush1.msra.mxu0 %v2571
        %2652 = vmatprep.subr.mxu0 %v2576
        %2653 = vmatpush1.msra.mxu0 %v2575
        %2654 = vmatprep.mubr.f32.mxu0 %v2587
        %2655 = vmatmul.mubr.f32.gmra.mrb[0].mxu0 %v2583
        %v2656 = vpop.f32.mrb[0].mxu0
        %v2657 = vadd.f32 0.0, %v2656
        %v2658 = vpop.f32.mrb[0].mxu0
        %v2659 = vadd.f32 0.0, %v2658
        %2660 = vdwg.mxu0
        %2661 = vmatprep.subr.mxu0 %v2454
        %2662 = vmatpush1.msra.mxu0 %v2453
        %2663 = vmatprep.subr.mxu0 %v2458
        %2664 = vmatpush1.msra.mxu0 %v2457
        %2665 = vmatprep.subr.mxu0 %v2462
        %2666 = vmatpush1.msra.mxu0 %v2461
        %2667 = vmatprep.subr.mxu0 %v2466
        %2668 = vmatpush1.msra.mxu0 %v2465
        %2669 = vmatprep.subr.mxu0 %v2470
        %2670 = vmatpush1.msra.mxu0 %v2469
        %2671 = vmatprep.subr.mxu0 %v2474
        %2672 = vmatpush1.msra.mxu0 %v2473
        %2673 = vmatprep.subr.mxu0 %v2478
        %2674 = vmatpush1.msra.mxu0 %v2477
        %2675 = vmatprep.subr.mxu0 %v2482
        %2676 = vmatpush1.msra.mxu0 %v2481
        %2677 = vmatprep.subr.mxu0 %v2486
        %2678 = vmatpush1.msra.mxu0 %v2485
        %2679 = vmatprep.subr.mxu0 %v2490
        %2680 = vmatpush1.msra.mxu0 %v2489
        %2681 = vmatprep.subr.mxu0 %v2494
        %2682 = vmatpush1.msra.mxu0 %v2493
        %2683 = vmatprep.subr.mxu0 %v2498
        %2684 = vmatpush1.msra.mxu0 %v2497
        %2685 = vmatprep.subr.mxu0 %v2502
        %2686 = vmatpush1.msra.mxu0 %v2501
        %2687 = vmatprep.subr.mxu0 %v2506
        %2688 = vmatpush1.msra.mxu0 %v2505
        %2689 = vmatprep.subr.mxu0 %v2510
        %2690 = vmatpush1.msra.mxu0 %v2509
        %2691 = vmatprep.subr.mxu0 %v2514
        %2692 = vmatpush1.msra.mxu0 %v2513
        %2693 = vmatprep.subr.mxu0 %v2518
        %2694 = vmatpush1.msra.mxu0 %v2517
        %2695 = vmatprep.subr.mxu0 %v2522
        %2696 = vmatpush1.msra.mxu0 %v2521
        %2697 = vmatprep.subr.mxu0 %v2526
        %2698 = vmatpush1.msra.mxu0 %v2525
        %2699 = vmatprep.subr.mxu0 %v2530
        %2700 = vmatpush1.msra.mxu0 %v2529
        %2701 = vmatprep.subr.mxu0 %v2534
        %2702 = vmatpush1.msra.mxu0 %v2533
        %2703 = vmatprep.subr.mxu0 %v2538
        %2704 = vmatpush1.msra.mxu0 %v2537
        %2705 = vmatprep.subr.mxu0 %v2542
        %2706 = vmatpush1.msra.mxu0 %v2541
        %2707 = vmatprep.subr.mxu0 %v2546
        %2708 = vmatpush1.msra.mxu0 %v2545
        %2709 = vmatprep.subr.mxu0 %v2550
        %2710 = vmatpush1.msra.mxu0 %v2549
        %2711 = vmatprep.subr.mxu0 %v2554
        %2712 = vmatpush1.msra.mxu0 %v2553
        %2713 = vmatprep.subr.mxu0 %v2558
        %2714 = vmatpush1.msra.mxu0 %v2557
        %2715 = vmatprep.subr.mxu0 %v2562
        %2716 = vmatpush1.msra.mxu0 %v2561
        %2717 = vmatprep.subr.mxu0 %v2566
        %2718 = vmatpush1.msra.mxu0 %v2565
        %2719 = vmatprep.subr.mxu0 %v2570
        %2720 = vmatpush1.msra.mxu0 %v2569
        %2721 = vmatprep.subr.mxu0 %v2574
        %2722 = vmatpush1.msra.mxu0 %v2573
        %2723 = vmatprep.subr.mxu0 %v2578
        %2724 = vmatpush1.msra.mxu0 %v2577
        %2725 = vmatprep.mubr.f32.mxu0 %v2587
        %2726 = vmatmul.mubr.f32.gmra.mrb[0].mxu0 %v2583
        %v2727 = vpop.f32.mrb[0].mxu0
        %v2728 = vadd.f32 0.0, %v2727
        %v2729 = vpop.f32.mrb[0].mxu0
        %v2730 = vadd.f32 0.0, %v2729
        %2731 = vdwg.mxu0
        %v2732 = vld [vmem:[%s293] sm:$0xf]
        %v2734 = vlaneseq
        %v2735 = vshrl.u32 %v2734, 7
        %v2736 = vsub.s32 0, %v2735
        %v2737 = vrot.slane %v349, %v2736
        %v2738 = vlaneseq
        %v2739 = vshrl.u32 %v2738, 7
        %v2740 = vsub.s32 1, %v2739
        %v2741 = vrot.slane %v349, %v2740
        %v2742 = vlaneseq
        %v2743 = vshrl.u32 %v2742, 7
        %v2744 = vsub.s32 2, %v2743
        %v2745 = vrot.slane %v349, %v2744
        %v2746 = vlaneseq
        %v2747 = vshrl.u32 %v2746, 7
        %v2748 = vsub.s32 3, %v2747
        %v2749 = vrot.slane %v349, %v2748
        %v2754 = vmul.f32 %v2657, %v2737
        %v2755 = vmul.f32 %v2659, %v2741
        %v2756 = vmul.f32 %v2728, %v2745
        %v2757 = vmul.f32 %v2730, %v2749
        %v2762 = vcombine.low %v2754, %v2755
        %v2763 = vcombine.low %v2756, %v2757
        %v2765 = vunpack.c.l.s4 1966171168
        %v2766 = vunpack.c.0.s8 %v2765
        %v2767 = vlaneseq
        %v2768 = vshrl.u32 %v2767, 7
        %v2769 = vsub.s32 %v2766, %v2768
        %v2770 = vrot.slane %v2762, %v2769
        %v2772 = vunpack.c.l.s4 1966171168
        %v2773 = vunpack.c.0.s8 %v2772
        %v2774 = vlaneseq
        %v2775 = vshrl.u32 %v2774, 7
        %v2776 = vsub.s32 %v2773, %v2775
        %v2777 = vrot.slane %v2763, %v2776
        %v2778 = vcombine.low %v2770, %v2777
        %v2780 = vunpack.c.l.s4 1966171168
        %v2781 = vunpack.c.0.s8 %v2780
        %v2782 = vlaneseq
        %v2783 = vshrl.u32 %v2782, 7
        %v2784 = vsub.s32 %v2781, %v2783
        %v2785 = vrot.slane %v2778, %v2784
        %v2787 = vadd.f32 %v2732, %v2785
        %v2788 = vlaneseq
        %vm2789 = vcmp.ge.s32.totalorder %v2788, 0
        %vm2790 = vcmp.lt.s32.totalorder %v2788, 512
        %vm2791 = vmand %vm2789, %vm2790
        %2792 = vst.msk [vmem:[%s293] sm:$0xf] %vm2791, %v2787
        %s2793 = sand.u32 %s148, 1
        %s2794 = scalar_lea.sflag [#allocation4], %s2793
        %s2795 = sand.u32 %s148, 1
        %s2796 = smul.addr %s2795, 4
        %s2797 = scalar_lea.vmem [#allocation7], %s2796
        // Predicated region
        $region49: #{tpu_custom_call.1} parent=35 // pred_check
          %p2798 = pneg %p158
        $region50: #{tpu_custom_call.1} parent=35 // pred_check_branch
          %2800 = sbr.rel (%p2798) target = $region52
        $region51: #{tpu_custom_call.1} parent=35 // pred_region
          %s2802 = ssub.s32 64, 64
          %2803 = vsyncadd %s2794, %s2802
          %s2804 = smul.addr %s28, 4
          %s2805 = smul.addr %s2804, 16
          %s2806 = scalar_lea.hbm %s4, %s2805
          %s2808 = sshll.u32 %s2797, 4
          %s2809 = int_to_ptr.vmem [resolvable:$true] %s2808
          %2811 = dma.vmem_to_hbm [thread:$0]  %s2809, 64, %s2806, %s2794
        $region52: #{tpu_custom_call.1} parent=35 // pred_fallthru
          _
      $region36: #{tpu_custom_call.1} parent=5 // pred_fallthru
        _
      %p2812 = scmp.le.s32.totalorder 2, %s19
      // Predicated region
      $region53: #{tpu_custom_call.1} parent=5 // pred_check
        %p2813 = pneg %p2812
      $region54: #{tpu_custom_call.1} parent=5 // pred_check_branch
        %2815 = sbr.rel (%p2813) target = $region56
      $region55: #{tpu_custom_call.1} parent=5 // pred_region
        %s2816 = ssub.s32 %s19, 2
        // Predicated region
        $region57: #{tpu_custom_call.1} parent=55 // pred_check
          %p2817 = pneg %p164
        $region58: #{tpu_custom_call.1} parent=55 // pred_check_branch
          %2819 = sbr.rel (%p2817) target = $region60
        $region59: #{tpu_custom_call.1} parent=55 // pred_region
          %s2820 = sand.u32 %s149, 1
          %s2821 = scalar_lea.sflag [#allocation4], %s2820
          %s2822 = sand.u32 %s149, 1
          %s2823 = smul.addr %s2822, 4
          %s2824 = scalar_lea.vmem [#allocation7], %s2823
          %2825 = dma.done %s2821, 64
        $region60: #{tpu_custom_call.1} parent=55 // pred_fallthru
          _
      $region56: #{tpu_custom_call.1} parent=5 // pred_fallthru
        _
    $region6: #{tpu_custom_call.1} parent=1 // loop_footer
      %s23 = sadd.s32 1, %s19
    $region7: #{tpu_custom_call.1} parent=1 // loop_footer_branch
      %18 = sbr.rel target = $region3
    $region8: #{tpu_custom_call.1} parent=1 // loop_exit
      _
    %2826 = vsyncpa [#allocation3], 1
    %s2827 = scalar_lea.sflag [#allocation3], 1
    %2828 = vsyncpa %s2827, 1
    %2829 = vsyncpa [#allocation6], 1
    %s2830 = scalar_lea.sflag [#allocation6], 1
    %2831 = vsyncpa %s2830, 1
    %2832 = vsyncpa [#allocation4], 1
    %s2833 = scalar_lea.sflag [#allocation4], 1
    %2834 = vsyncpa %s2833, 1

</llo_original>
